<compile_context>
chip_gen: v5e
topology: v5e:2x2
jax: 0.10.0
libtpu: 0.0.40
codegen_flags: <defaults>
</compile_context>

<pallas_src>
import functools

import jax
import jax.numpy as jnp
import numpy as np
from jax import lax
from jax.experimental import pallas as pl
from jax.experimental.pallas import tpu as pltpu

_B_CHUNK = 8  # sublane-aligned per-step row granule


# ----------------------------------------------------------------------------
# Fused Pallas kernel: LSTM layer 0 -> LSTM layer 1 -> Linear projection
# ----------------------------------------------------------------------------
def _fused_single_rnn_kernel(
    # inputs
    x_ref, wih0_ref, whh0_ref, b0_ref, wih1_ref, whh1_ref, b1_ref, wp_ref, bp_ref,
    # outputs
    y_ref,
    # scratch (persists across grid steps)
    h0_ref, c0_ref, h1_ref, c1_ref, gin_ref, hbuf_ref,
    *, t_tile, bc, hidden, unroll,
):
    H = hidden

    # Zero the recurrent carries at the first time block of each batch chunk.
    @pl.when(pl.program_id(1) == 0)
    def _init():
        zeros = jnp.zeros((bc, H), jnp.float32)
        h0_ref[...] = zeros
        c0_ref[...] = zeros
        h1_ref[...] = zeros
        c1_ref[...] = zeros

    def recurrence(whh, h_init, c_init):
        """Sequential LSTM cell loop; input projection already in gin_ref.

        The g-gate columns of gin_ref / whh are pre-scaled by 2 so that one
        full-width sigmoid covers all four gates (tanh(x) = 2*sigmoid(2x) - 1).
        """

        def step(t, carry):
            h, c = carry
            row = pl.multiple_of(t * bc, bc)          # bc == 8 -> 8-aligned slices
            # Only the tiny recurrent matmul stays on the sequential path.
            gates = gin_ref[pl.ds(row, bc), :] + jnp.dot(
                h, whh, preferred_element_type=jnp.float32
            )
            # Single full-width (4H lanes) EUP pass for all gates.
            s = jax.nn.sigmoid(gates)
            i = s[:, 0 * H:1 * H]
            f = s[:, 1 * H:2 * H]
            g = 2.0 * s[:, 2 * H:3 * H] - 1.0          # == tanh(pre-activation)
            o = s[:, 3 * H:4 * H]
            c_new = f * c + i * g
            h_new = o * jnp.tanh(c_new)
            hbuf_ref[pl.ds(row, bc), :] = h_new
            return h_new, c_new

        return lax.fori_loop(0, t_tile, step, (h_init, c_init), unroll=unroll)

    # ---- layer 0: hoisted input projection (one MXU matmul per block) ----
    gin_ref[...] = (
        jnp.dot(x_ref[...].astype(jnp.float32), wih0_ref[...],
                preferred_element_type=jnp.float32)
        + b0_ref[...]
    )
    h0, c0 = recurrence(whh0_ref[...], h0_ref[...], c0_ref[...])
    h0_ref[...] = h0
    c0_ref[...] = c0

    # (module default dropout=0 -> inter-layer dropout is a no-op)

    # ---- layer 1: hoisted input projection on the whole block of layer-0 h ----
    gin_ref[...] = (
        jnp.dot(hbuf_ref[...], wih1_ref[...], preferred_element_type=jnp.float32)
        + b1_ref[...]
    )
    h1, c1 = recurrence(whh1_ref[...], h1_ref[...], c1_ref[...])
    h1_ref[...] = h1
    c1_ref[...] = c1

    # ---- fused output projection for the whole block ----
    y_ref[...] = (
        jnp.dot(hbuf_ref[...], wp_ref[...], preferred_element_type=jnp.float32)
        + bp_ref[...]
    ).astype(y_ref.dtype)


# ----------------------------------------------------------------------------
# Wrapper helpers
# ----------------------------------------------------------------------------
def _vmem_budget():
    """Generation-aware (tile_budget, vmem_limit) in bytes."""
    cap = None
    try:
        info = pltpu.get_tpu_info()
        cap = getattr(info, "vmem_capacity_bytes", None)
    except Exception:
        cap = None
    if cap is not None and cap >= 96 * 1024 * 1024:
        # v5e / v6e: 128 MiB physical VMEM -> bigger time tiles.
        return 64 * 1024 * 1024, 100 * 1024 * 1024
    # v7x (64 MiB physical) or unknown -> conservative.
    return 24 * 1024 * 1024, 48 * 1024 * 1024


def _choose_t_tile(T, bc, D, H, budget_bytes):
    """Largest time tile (divisor of T) fitting the VMEM working-set budget."""
    f32 = 4

    def est(tt):
        rows = tt * bc
        io = 2 * 2 * rows * D * f32                                   # x & y blocks, double-buffered
        w = 2 * f32 * (D * 4 * H + 3 * H * 4 * H + 2 * 4 * H + H * D + D)
        scr = f32 * (4 * bc * H + rows * 4 * H + rows * H)
        return io + w + scr

    for tt in sorted((d for d in range(1, T + 1) if T % d == 0), reverse=True):
        if est(tt) <= budget_bytes:
            return tt
    return 1


def _scale_g_columns(m, H):
    """Scale the g-gate quarter of a (..., 4H) weight/bias by 2 (tanh-via-sigmoid)."""
    return m.at[..., 2 * H:3 * H].multiply(2.0)


def single_rnn_forward(x, params):
    """SingleRNN.forward: x (B, T, input_size) -> (B, T, input_size)."""
    B, T, D = x.shape
    H = params["l0"][1].shape[1]
    bc = _B_CHUNK

    w_ih0, w_hh0, b_ih0, b_hh0 = params["l0"]
    w_ih1, w_hh1, b_ih1, b_hh1 = params["l1"]

    # Pre-transpose weights once (outside the kernel); fold the x2 scale on the
    # g-gate columns so the kernel runs a single full-width sigmoid per step.
    wih0_t = _scale_g_columns(jnp.transpose(w_ih0), H)                 # (D, 4H)
    whh0_t = _scale_g_columns(jnp.transpose(w_hh0), H)                 # (H, 4H)
    b0 = _scale_g_columns((b_ih0 + b_hh0).reshape(1, 4 * H), H)
    wih1_t = _scale_g_columns(jnp.transpose(w_ih1), H)                 # (H, 4H)
    whh1_t = _scale_g_columns(jnp.transpose(w_hh1), H)                 # (H, 4H)
    b1 = _scale_g_columns((b_ih1 + b_hh1).reshape(1, 4 * H), H)
    wp_t = jnp.transpose(params["proj_w"])                             # (H, D)
    bp = params["proj_b"].reshape(1, D)

    # Pad batch to a multiple of the 8-row chunk (zero rows; discarded at the end).
    Bp = ((B + bc - 1) // bc) * bc
    n_bc = Bp // bc

    budget, vmem_limit = _vmem_budget()
    t_tile = _choose_t_tile(T, bc, D, H, budget)
    n_tb = T // t_tile
    rows = t_tile * bc

    # Layout: row index = ((batch_chunk * T + t) * bc + b), lanes = features.
    # TODO(synk): at production T, read x directly via a 3-D BlockSpec instead
    #             of this wrapper-side transpose/reshape pass.
    x_p = jnp.pad(x, ((0, Bp - B), (0, 0), (0, 0)))
    x_rows = (
        x_p.reshape(n_bc, bc, T, D)
        .transpose(0, 2, 1, 3)                                         # (n_bc, T, bc, D)
        .reshape(n_bc * T * bc, D)
    )

    kernel = functools.partial(
        _fused_single_rnn_kernel,
        t_tile=t_tile, bc=bc, hidden=H, unroll=max(1, min(8, t_tile)),
    )

    row_map = lambda bci, tb: (bci * n_tb + tb, 0)
    const_map = lambda bci, tb: (0, 0)

    y_rows = pl.pallas_call(
        kernel,
        out_shape=jax.ShapeDtypeStruct((n_bc * T * bc, D), x.dtype),
        grid_spec=pltpu.PrefetchScalarGridSpec(
            num_scalar_prefetch=0,
            grid=(n_bc, n_tb),                                         # (batch chunks, time blocks)
            in_specs=[
                pl.BlockSpec((rows, D), row_map),                      # x block (streamed)
                pl.BlockSpec((D, 4 * H), const_map),                   # W_ih^T  layer 0 (resident)
                pl.BlockSpec((H, 4 * H), const_map),                   # W_hh^T  layer 0
                pl.BlockSpec((1, 4 * H), const_map),                   # bias    layer 0
                pl.BlockSpec((H, 4 * H), const_map),                   # W_ih^T  layer 1
                pl.BlockSpec((H, 4 * H), const_map),                   # W_hh^T  layer 1
                pl.BlockSpec((1, 4 * H), const_map),                   # bias    layer 1
                pl.BlockSpec((H, D), const_map),                       # W_proj^T
                pl.BlockSpec((1, D), const_map),                       # b_proj
            ],
            out_specs=pl.BlockSpec((rows, D), row_map),                # y block (streamed)
            scratch_shapes=[
                pltpu.VMEM((bc, H), jnp.float32),                      # h carry, layer 0
                pltpu.VMEM((bc, H), jnp.float32),                      # c carry, layer 0
                pltpu.VMEM((bc, H), jnp.float32),                      # h carry, layer 1
                pltpu.VMEM((bc, H), jnp.float32),                      # c carry, layer 1
                pltpu.VMEM((rows, 4 * H), jnp.float32),                # hoisted gate slab (reused l0/l1)
                pltpu.VMEM((rows, H), jnp.float32),                    # per-block hidden states (reused l0/l1)
            ],
        ),
        compiler_params=pltpu.CompilerParams(
            dimension_semantics=("parallel", "arbitrary"),             # batch chunks parallel, time serial
            vmem_limit_bytes=vmem_limit,
        ),
    )(x_rows, wih0_t, whh0_t, b0, wih1_t, whh1_t, b1, wp_t, bp)

    y = (
        y_rows.reshape(n_bc, T, bc, D)
        .transpose(0, 2, 1, 3)                                         # (n_bc, bc, T, D)
        .reshape(Bp, T, D)
    )
    return y[:B]


single_rnn_forward_jit = jax.jit(single_rnn_forward)


# ----------------------------------------------------------------------------
# Pure-JAX reference (correctness check)
# ----------------------------------------------------------------------------
def _ref_lstm_layer(x_tbd, w_ih, w_hh, b_ih, b_hh):
    H = w_hh.shape[1]
    B = x_tbd.shape[1]

    def step(carry, x_t):
        h, c = carry
        gates = x_t @ w_ih.T + b_ih + h @ w_hh.T + b_hh
        i = jax.nn.sigmoid(gates[:, 0 * H:1 * H])
        f = jax.nn.sigmoid(gates[:, 1 * H:2 * H])
        g = jnp.tanh(gates[:, 2 * H:3 * H])
        o = jax.nn.sigmoid(gates[:, 3 * H:4 * H])
        c = f * c + i * g
        h = o * jnp.tanh(c)
        return (h, c), h

    init = (jnp.zeros((B, H), jnp.float32), jnp.zeros((B, H), jnp.float32))
    _, hs = lax.scan(step, init, x_tbd)
    return hs


def _ref_forward(x, params):
    B, T, D = x.shape
    x_tm = jnp.transpose(x, (1, 0, 2))
    h = _ref_lstm_layer(x_tm, *params["l0"])
    h = _ref_lstm_layer(h, *params["l1"])
    h_flat = jnp.transpose(h, (1, 0, 2)).reshape(B * T, -1)
    y = h_flat @ params["proj_w"].T + params["proj_b"]
    return y.reshape(B, T, D)


# ----------------------------------------------------------------------------
# Parameter construction (deterministic, PyTorch-shaped)
# ----------------------------------------------------------------------------
def make_params(key, input_size, hidden_size):
    bound = 1.0 / np.sqrt(hidden_size)
    keys = jax.random.split(key, 10)

    def u(k, shape):
        return jax.random.uniform(k, shape, jnp.float32, -bound, bound)

    return {
        # layer 0: input_size -> hidden_size
        "l0": (
            u(keys[0], (4 * hidden_size, input_size)),   # weight_ih_l0
            u(keys[1], (4 * hidden_size, hidden_size)),  # weight_hh_l0
            u(keys[2], (4 * hidden_size,)),              # bias_ih_l0
            u(keys[3], (4 * hidden_size,)),              # bias_hh_l0
        ),
        # layer 1: hidden_size -> hidden_size
        "l1": (
            u(keys[4], (4 * hidden_size, hidden_size)),  # weight_ih_l1
            u(keys[5], (4 * hidden_size, hidden_size)),  # weight_hh_l1
            u(keys[6], (4 * hidden_size,)),              # bias_ih_l1
            u(keys[7], (4 * hidden_size,)),              # bias_hh_l1
        ),
        # proj: Linear(hidden_size -> input_size)
        "proj_w": u(keys[8], (input_size, hidden_size)),
        "proj_b": u(keys[9], (input_size,)),
    }


if __name__ == "__main__":
    batch, seq_len, input_size, hidden_size = 2, 8, 16, 32

    key = jax.random.PRNGKey(0)
    k_x, k_p = jax.random.split(key)
    x = jax.random.normal(k_x, (batch, seq_len, input_size), jnp.float32)
    params = make_params(k_p, input_size, hidden_size)

    out = jax.block_until_ready(single_rnn_forward_jit(x, params))
    ref = jax.block_until_ready(_ref_forward(x, params))

    np.testing.assert_allclose(np.asarray(out), np.asarray(ref), rtol=5e-5, atol=5e-5)
    assert out.shape == x.shape

    print("KERNEL_OK")
</pallas_src>

<mosaic_0001>
module attributes {stable_mosaic.version = 11 : i64} {
  func.func @_fused_single_rnn_kernel(%arg0: i32, %arg1: i32, %arg2: memref<64x16xf32, #tpu.memory_space<vmem>>, %arg3: memref<16x128xf32, #tpu.memory_space<vmem>>, %arg4: memref<32x128xf32, #tpu.memory_space<vmem>>, %arg5: memref<1x128xf32, #tpu.memory_space<vmem>>, %arg6: memref<32x128xf32, #tpu.memory_space<vmem>>, %arg7: memref<32x128xf32, #tpu.memory_space<vmem>>, %arg8: memref<1x128xf32, #tpu.memory_space<vmem>>, %arg9: memref<32x16xf32, #tpu.memory_space<vmem>>, %arg10: memref<1x16xf32, #tpu.memory_space<vmem>>, %arg11: memref<64x16xf32, #tpu.memory_space<vmem>>, %arg12: memref<8x32xf32, #tpu.memory_space<vmem>>, %arg13: memref<8x32xf32, #tpu.memory_space<vmem>>, %arg14: memref<8x32xf32, #tpu.memory_space<vmem>>, %arg15: memref<8x32xf32, #tpu.memory_space<vmem>>, %arg16: memref<64x128xf32, #tpu.memory_space<vmem>>, %arg17: memref<64x32xf32, #tpu.memory_space<vmem>>) attributes {dimension_semantics = [#tpu.dimension_semantics<parallel>, #tpu.dimension_semantics<arbitrary>], iteration_bounds = array<i64: 1, 1>, scalar_prefetch = 0 : i64, scratch_operands = 6 : i64, tpu.core_type = #tpu.core_type<tc>, window_params = [{transform_indices = @transform_0, window_bounds = array<i64: 64, 16>}, {pipeline_mode = #tpu.pipeline_mode<synchronous>, transform_indices = @transform_1, window_bounds = array<i64: 16, 128>}, {pipeline_mode = #tpu.pipeline_mode<synchronous>, transform_indices = @transform_2, window_bounds = array<i64: 32, 128>}, {pipeline_mode = #tpu.pipeline_mode<synchronous>, transform_indices = @transform_3, window_bounds = array<i64: 1, 128>}, {pipeline_mode = #tpu.pipeline_mode<synchronous>, transform_indices = @transform_4, window_bounds = array<i64: 32, 128>}, {pipeline_mode = #tpu.pipeline_mode<synchronous>, transform_indices = @transform_5, window_bounds = array<i64: 32, 128>}, {pipeline_mode = #tpu.pipeline_mode<synchronous>, transform_indices = @transform_6, window_bounds = array<i64: 1, 128>}, {pipeline_mode = #tpu.pipeline_mode<synchronous>, transform_indices = @transform_7, window_bounds = array<i64: 32, 16>}, {pipeline_mode = #tpu.pipeline_mode<synchronous>, transform_indices = @transform_8, window_bounds = array<i64: 1, 16>}, {transform_indices = @transform_9, window_bounds = array<i64: 64, 16>}]} {
    %c0_i32 = arith.constant 0 : i32
    %0 = arith.cmpi eq, %arg1, %c0_i32 : i32
    %1 = arith.extui %0 : i1 to i32
    %c0_i32_0 = arith.constant 0 : i32
    %2 = arith.cmpi ne, %1, %c0_i32_0 : i32
    scf.if %2 {
      %cst_168 = arith.constant 0.000000e+00 : f32
      %450 = vector.broadcast %cst_168 : f32 to vector<8x32xf32>
      %c0_169 = arith.constant 0 : index
      %c0_170 = arith.constant 0 : index
      %451 = vector.load %arg12[%c0_169, %c0_170] : memref<8x32xf32, #tpu.memory_space<vmem>>, vector<8x32xf32>
      tpu.vector_store %arg12[%c0_169, %c0_170], %450 {strides = array<i32>} : memref<8x32xf32, #tpu.memory_space<vmem>>, vector<8x32xf32>,
      %c0_171 = arith.constant 0 : index
      %c0_172 = arith.constant 0 : index
      %452 = vector.load %arg13[%c0_171, %c0_172] : memref<8x32xf32, #tpu.memory_space<vmem>>, vector<8x32xf32>
      tpu.vector_store %arg13[%c0_171, %c0_172], %450 {strides = array<i32>} : memref<8x32xf32, #tpu.memory_space<vmem>>, vector<8x32xf32>,
      %c0_173 = arith.constant 0 : index
      %c0_174 = arith.constant 0 : index
      %453 = vector.load %arg14[%c0_173, %c0_174] : memref<8x32xf32, #tpu.memory_space<vmem>>, vector<8x32xf32>
      tpu.vector_store %arg14[%c0_173, %c0_174], %450 {strides = array<i32>} : memref<8x32xf32, #tpu.memory_space<vmem>>, vector<8x32xf32>,
      %c0_175 = arith.constant 0 : index
      %c0_176 = arith.constant 0 : index
      %454 = vector.load %arg15[%c0_175, %c0_176] : memref<8x32xf32, #tpu.memory_space<vmem>>, vector<8x32xf32>
      tpu.vector_store %arg15[%c0_175, %c0_176], %450 {strides = array<i32>} : memref<8x32xf32, #tpu.memory_space<vmem>>, vector<8x32xf32>,
    } else {
    }
    %c0 = arith.constant 0 : index
    %c0_1 = arith.constant 0 : index
    %3 = vector.load %arg2[%c0, %c0_1] : memref<64x16xf32, #tpu.memory_space<vmem>>, vector<64x16xf32>
    %c0_2 = arith.constant 0 : index
    %c0_3 = arith.constant 0 : index
    %4 = vector.load %arg3[%c0_2, %c0_3] : memref<16x128xf32, #tpu.memory_space<vmem>>, vector<16x128xf32>
    %cst = arith.constant dense<0.000000e+00> : vector<64x128xf32>
    %5 = tpu.matmul %3, %4, %cst {dimension_numbers = #tpu.dot_dimension_numbers<[1], [0], [0], [1], [0, 0, 1, 1], [], []>} : vector<64x16xf32>, vector<16x128xf32>, vector<64x128xf32> -> vector<64x128xf32>
    %c0_4 = arith.constant 0 : index
    %c0_5 = arith.constant 0 : index
    %6 = vector.load %arg5[%c0_4, %c0_5] : memref<1x128xf32, #tpu.memory_space<vmem>>, vector<1x128xf32>
    %7 = vector.broadcast %6 : vector<1x128xf32> to vector<64x128xf32>
    %8 = arith.addf %5, %7 : vector<64x128xf32>
    %c0_6 = arith.constant 0 : index
    %c0_7 = arith.constant 0 : index
    %9 = vector.load %arg16[%c0_6, %c0_7] : memref<64x128xf32, #tpu.memory_space<vmem>>, vector<64x128xf32>
    tpu.vector_store %arg16[%c0_6, %c0_7], %8 {strides = array<i32>} : memref<64x128xf32, #tpu.memory_space<vmem>>, vector<64x128xf32>,
    %c0_8 = arith.constant 0 : index
    %c0_9 = arith.constant 0 : index
    %10 = vector.load %arg4[%c0_8, %c0_9] : memref<32x128xf32, #tpu.memory_space<vmem>>, vector<32x128xf32>
    %c0_10 = arith.constant 0 : index
    %c0_11 = arith.constant 0 : index
    %11 = vector.load %arg12[%c0_10, %c0_11] : memref<8x32xf32, #tpu.memory_space<vmem>>, vector<8x32xf32>
    %c0_12 = arith.constant 0 : index
    %c0_13 = arith.constant 0 : index
    %12 = vector.load %arg13[%c0_12, %c0_13] : memref<8x32xf32, #tpu.memory_space<vmem>>, vector<8x32xf32>
    %c0_i32_14 = arith.constant 0 : i32
    %c8_i32 = arith.constant 8 : i32
    %13 = arith.muli %c0_i32_14, %c8_i32 : i32
    %14 = tpu.assume_multiple %13, 8 : i32
    %15 = arith.index_cast %14 : i32 to index
    %c0_15 = arith.constant 0 : index
    %16 = vector.load %arg16[%15, %c0_15] : memref<64x128xf32, #tpu.memory_space<vmem>>, vector<8x128xf32>
    %cst_16 = arith.constant dense<0.000000e+00> : vector<8x128xf32>
    %17 = tpu.matmul %11, %10, %cst_16 {dimension_numbers = #tpu.dot_dimension_numbers<[1], [0], [0], [1], [0, 0, 1, 1], [], []>} : vector<8x32xf32>, vector<32x128xf32>, vector<8x128xf32> -> vector<8x128xf32>
    %18 = arith.addf %16, %17 : vector<8x128xf32>
    %19 = arith.negf %18 : vector<8x128xf32>
    %20 = math.exp %19 : vector<8x128xf32>
    %cst_17 = arith.constant 1.000000e+00 : f32
    %21 = vector.broadcast %cst_17 : f32 to vector<8x128xf32>
    %22 = arith.addf %21, %20 : vector<8x128xf32>
    %23 = arith.divf %21, %22 : vector<8x128xf32>
    %24 = vector.extract_strided_slice %23 {offsets = [0, 0], sizes = [8, 32], strides = [1, 1]} : vector<8x128xf32> to vector<8x32xf32>
    %25 = vector.extract_strided_slice %23 {offsets = [0, 32], sizes = [8, 32], strides = [1, 1]} : vector<8x128xf32> to vector<8x32xf32>
    %26 = vector.extract_strided_slice %23 {offsets = [0, 64], sizes = [8, 32], strides = [1, 1]} : vector<8x128xf32> to vector<8x32xf32>
    %cst_18 = arith.constant 2.000000e+00 : f32
    %27 = vector.broadcast %cst_18 : f32 to vector<8x32xf32>
    %28 = arith.mulf %27, %26 : vector<8x32xf32>
    %cst_19 = arith.constant 1.000000e+00 : f32
    %29 = vector.broadcast %cst_19 : f32 to vector<8x32xf32>
    %30 = arith.subf %28, %29 : vector<8x32xf32>
    %31 = vector.extract_strided_slice %23 {offsets = [0, 96], sizes = [8, 32], strides = [1, 1]} : vector<8x128xf32> to vector<8x32xf32>
    %32 = arith.mulf %25, %12 : vector<8x32xf32>
    %33 = arith.mulf %24, %30 : vector<8x32xf32>
    %34 = arith.addf %32, %33 : vector<8x32xf32>
    %35 = math.tanh %34 : vector<8x32xf32>
    %36 = arith.mulf %31, %35 : vector<8x32xf32>
    %37 = arith.index_cast %14 : i32 to index
    %c0_20 = arith.constant 0 : index
    %38 = vector.load %arg17[%37, %c0_20] : memref<64x32xf32, #tpu.memory_space<vmem>>, vector<8x32xf32>
    tpu.vector_store %arg17[%37, %c0_20], %36 {strides = array<i32>} : memref<64x32xf32, #tpu.memory_space<vmem>>, vector<8x32xf32>,
    %c1_i32 = arith.constant 1 : i32
    %c8_i32_21 = arith.constant 8 : i32
    %39 = arith.muli %c1_i32, %c8_i32_21 : i32
    %40 = tpu.assume_multiple %39, 8 : i32
    %41 = arith.index_cast %40 : i32 to index
    %c0_22 = arith.constant 0 : index
    %42 = vector.load %arg16[%41, %c0_22] : memref<64x128xf32, #tpu.memory_space<vmem>>, vector<8x128xf32>
    %cst_23 = arith.constant dense<0.000000e+00> : vector<8x128xf32>
    %43 = tpu.matmul %36, %10, %cst_23 {dimension_numbers = #tpu.dot_dimension_numbers<[1], [0], [0], [1], [0, 0, 1, 1], [], []>} : vector<8x32xf32>, vector<32x128xf32>, vector<8x128xf32> -> vector<8x128xf32>
    %44 = arith.addf %42, %43 : vector<8x128xf32>
    %45 = arith.negf %44 : vector<8x128xf32>
    %46 = math.exp %45 : vector<8x128xf32>
    %cst_24 = arith.constant 1.000000e+00 : f32
    %47 = vector.broadcast %cst_24 : f32 to vector<8x128xf32>
    %48 = arith.addf %47, %46 : vector<8x128xf32>
    %49 = arith.divf %47, %48 : vector<8x128xf32>
    %50 = vector.extract_strided_slice %49 {offsets = [0, 0], sizes = [8, 32], strides = [1, 1]} : vector<8x128xf32> to vector<8x32xf32>
    %51 = vector.extract_strided_slice %49 {offsets = [0, 32], sizes = [8, 32], strides = [1, 1]} : vector<8x128xf32> to vector<8x32xf32>
    %52 = vector.extract_strided_slice %49 {offsets = [0, 64], sizes = [8, 32], strides = [1, 1]} : vector<8x128xf32> to vector<8x32xf32>
    %cst_25 = arith.constant 2.000000e+00 : f32
    %53 = vector.broadcast %cst_25 : f32 to vector<8x32xf32>
    %54 = arith.mulf %53, %52 : vector<8x32xf32>
    %cst_26 = arith.constant 1.000000e+00 : f32
    %55 = vector.broadcast %cst_26 : f32 to vector<8x32xf32>
    %56 = arith.subf %54, %55 : vector<8x32xf32>
    %57 = vector.extract_strided_slice %49 {offsets = [0, 96], sizes = [8, 32], strides = [1, 1]} : vector<8x128xf32> to vector<8x32xf32>
    %58 = arith.mulf %51, %34 : vector<8x32xf32>
    %59 = arith.mulf %50, %56 : vector<8x32xf32>
    %60 = arith.addf %58, %59 : vector<8x32xf32>
    %61 = math.tanh %60 : vector<8x32xf32>
    %62 = arith.mulf %57, %61 : vector<8x32xf32>
    %63 = arith.index_cast %40 : i32 to index
    %c0_27 = arith.constant 0 : index
    %64 = vector.load %arg17[%63, %c0_27] : memref<64x32xf32, #tpu.memory_space<vmem>>, vector<8x32xf32>
    tpu.vector_store %arg17[%63, %c0_27], %62 {strides = array<i32>} : memref<64x32xf32, #tpu.memory_space<vmem>>, vector<8x32xf32>,
    %c2_i32 = arith.constant 2 : i32
    %c8_i32_28 = arith.constant 8 : i32
    %65 = arith.muli %c2_i32, %c8_i32_28 : i32
    %66 = tpu.assume_multiple %65, 8 : i32
    %67 = arith.index_cast %66 : i32 to index
    %c0_29 = arith.constant 0 : index
    %68 = vector.load %arg16[%67, %c0_29] : memref<64x128xf32, #tpu.memory_space<vmem>>, vector<8x128xf32>
    %cst_30 = arith.constant dense<0.000000e+00> : vector<8x128xf32>
    %69 = tpu.matmul %62, %10, %cst_30 {dimension_numbers = #tpu.dot_dimension_numbers<[1], [0], [0], [1], [0, 0, 1, 1], [], []>} : vector<8x32xf32>, vector<32x128xf32>, vector<8x128xf32> -> vector<8x128xf32>
    %70 = arith.addf %68, %69 : vector<8x128xf32>
    %71 = arith.negf %70 : vector<8x128xf32>
    %72 = math.exp %71 : vector<8x128xf32>
    %cst_31 = arith.constant 1.000000e+00 : f32
    %73 = vector.broadcast %cst_31 : f32 to vector<8x128xf32>
    %74 = arith.addf %73, %72 : vector<8x128xf32>
    %75 = arith.divf %73, %74 : vector<8x128xf32>
    %76 = vector.extract_strided_slice %75 {offsets = [0, 0], sizes = [8, 32], strides = [1, 1]} : vector<8x128xf32> to vector<8x32xf32>
    %77 = vector.extract_strided_slice %75 {offsets = [0, 32], sizes = [8, 32], strides = [1, 1]} : vector<8x128xf32> to vector<8x32xf32>
    %78 = vector.extract_strided_slice %75 {offsets = [0, 64], sizes = [8, 32], strides = [1, 1]} : vector<8x128xf32> to vector<8x32xf32>
    %cst_32 = arith.constant 2.000000e+00 : f32
    %79 = vector.broadcast %cst_32 : f32 to vector<8x32xf32>
    %80 = arith.mulf %79, %78 : vector<8x32xf32>
    %cst_33 = arith.constant 1.000000e+00 : f32
    %81 = vector.broadcast %cst_33 : f32 to vector<8x32xf32>
    %82 = arith.subf %80, %81 : vector<8x32xf32>
    %83 = vector.extract_strided_slice %75 {offsets = [0, 96], sizes = [8, 32], strides = [1, 1]} : vector<8x128xf32> to vector<8x32xf32>
    %84 = arith.mulf %77, %60 : vector<8x32xf32>
    %85 = arith.mulf %76, %82 : vector<8x32xf32>
    %86 = arith.addf %84, %85 : vector<8x32xf32>
    %87 = math.tanh %86 : vector<8x32xf32>
    %88 = arith.mulf %83, %87 : vector<8x32xf32>
    %89 = arith.index_cast %66 : i32 to index
    %c0_34 = arith.constant 0 : index
    %90 = vector.load %arg17[%89, %c0_34] : memref<64x32xf32, #tpu.memory_space<vmem>>, vector<8x32xf32>
    tpu.vector_store %arg17[%89, %c0_34], %88 {strides = array<i32>} : memref<64x32xf32, #tpu.memory_space<vmem>>, vector<8x32xf32>,
    %c3_i32 = arith.constant 3 : i32
    %c8_i32_35 = arith.constant 8 : i32
    %91 = arith.muli %c3_i32, %c8_i32_35 : i32
    %92 = tpu.assume_multiple %91, 8 : i32
    %93 = arith.index_cast %92 : i32 to index
    %c0_36 = arith.constant 0 : index
    %94 = vector.load %arg16[%93, %c0_36] : memref<64x128xf32, #tpu.memory_space<vmem>>, vector<8x128xf32>
    %cst_37 = arith.constant dense<0.000000e+00> : vector<8x128xf32>
    %95 = tpu.matmul %88, %10, %cst_37 {dimension_numbers = #tpu.dot_dimension_numbers<[1], [0], [0], [1], [0, 0, 1, 1], [], []>} : vector<8x32xf32>, vector<32x128xf32>, vector<8x128xf32> -> vector<8x128xf32>
    %96 = arith.addf %94, %95 : vector<8x128xf32>
    %97 = arith.negf %96 : vector<8x128xf32>
    %98 = math.exp %97 : vector<8x128xf32>
    %cst_38 = arith.constant 1.000000e+00 : f32
    %99 = vector.broadcast %cst_38 : f32 to vector<8x128xf32>
    %100 = arith.addf %99, %98 : vector<8x128xf32>
    %101 = arith.divf %99, %100 : vector<8x128xf32>
    %102 = vector.extract_strided_slice %101 {offsets = [0, 0], sizes = [8, 32], strides = [1, 1]} : vector<8x128xf32> to vector<8x32xf32>
    %103 = vector.extract_strided_slice %101 {offsets = [0, 32], sizes = [8, 32], strides = [1, 1]} : vector<8x128xf32> to vector<8x32xf32>
    %104 = vector.extract_strided_slice %101 {offsets = [0, 64], sizes = [8, 32], strides = [1, 1]} : vector<8x128xf32> to vector<8x32xf32>
    %cst_39 = arith.constant 2.000000e+00 : f32
    %105 = vector.broadcast %cst_39 : f32 to vector<8x32xf32>
    %106 = arith.mulf %105, %104 : vector<8x32xf32>
    %cst_40 = arith.constant 1.000000e+00 : f32
    %107 = vector.broadcast %cst_40 : f32 to vector<8x32xf32>
    %108 = arith.subf %106, %107 : vector<8x32xf32>
    %109 = vector.extract_strided_slice %101 {offsets = [0, 96], sizes = [8, 32], strides = [1, 1]} : vector<8x128xf32> to vector<8x32xf32>
    %110 = arith.mulf %103, %86 : vector<8x32xf32>
    %111 = arith.mulf %102, %108 : vector<8x32xf32>
    %112 = arith.addf %110, %111 : vector<8x32xf32>
    %113 = math.tanh %112 : vector<8x32xf32>
    %114 = arith.mulf %109, %113 : vector<8x32xf32>
    %115 = arith.index_cast %92 : i32 to index
    %c0_41 = arith.constant 0 : index
    %116 = vector.load %arg17[%115, %c0_41] : memref<64x32xf32, #tpu.memory_space<vmem>>, vector<8x32xf32>
    tpu.vector_store %arg17[%115, %c0_41], %114 {strides = array<i32>} : memref<64x32xf32, #tpu.memory_space<vmem>>, vector<8x32xf32>,
    %c4_i32 = arith.constant 4 : i32
    %c8_i32_42 = arith.constant 8 : i32
    %117 = arith.muli %c4_i32, %c8_i32_42 : i32
    %118 = tpu.assume_multiple %117, 8 : i32
    %119 = arith.index_cast %118 : i32 to index
    %c0_43 = arith.constant 0 : index
    %120 = vector.load %arg16[%119, %c0_43] : memref<64x128xf32, #tpu.memory_space<vmem>>, vector<8x128xf32>
    %cst_44 = arith.constant dense<0.000000e+00> : vector<8x128xf32>
    %121 = tpu.matmul %114, %10, %cst_44 {dimension_numbers = #tpu.dot_dimension_numbers<[1], [0], [0], [1], [0, 0, 1, 1], [], []>} : vector<8x32xf32>, vector<32x128xf32>, vector<8x128xf32> -> vector<8x128xf32>
    %122 = arith.addf %120, %121 : vector<8x128xf32>
    %123 = arith.negf %122 : vector<8x128xf32>
    %124 = math.exp %123 : vector<8x128xf32>
    %cst_45 = arith.constant 1.000000e+00 : f32
    %125 = vector.broadcast %cst_45 : f32 to vector<8x128xf32>
    %126 = arith.addf %125, %124 : vector<8x128xf32>
    %127 = arith.divf %125, %126 : vector<8x128xf32>
    %128 = vector.extract_strided_slice %127 {offsets = [0, 0], sizes = [8, 32], strides = [1, 1]} : vector<8x128xf32> to vector<8x32xf32>
    %129 = vector.extract_strided_slice %127 {offsets = [0, 32], sizes = [8, 32], strides = [1, 1]} : vector<8x128xf32> to vector<8x32xf32>
    %130 = vector.extract_strided_slice %127 {offsets = [0, 64], sizes = [8, 32], strides = [1, 1]} : vector<8x128xf32> to vector<8x32xf32>
    %cst_46 = arith.constant 2.000000e+00 : f32
    %131 = vector.broadcast %cst_46 : f32 to vector<8x32xf32>
    %132 = arith.mulf %131, %130 : vector<8x32xf32>
    %cst_47 = arith.constant 1.000000e+00 : f32
    %133 = vector.broadcast %cst_47 : f32 to vector<8x32xf32>
    %134 = arith.subf %132, %133 : vector<8x32xf32>
    %135 = vector.extract_strided_slice %127 {offsets = [0, 96], sizes = [8, 32], strides = [1, 1]} : vector<8x128xf32> to vector<8x32xf32>
    %136 = arith.mulf %129, %112 : vector<8x32xf32>
    %137 = arith.mulf %128, %134 : vector<8x32xf32>
    %138 = arith.addf %136, %137 : vector<8x32xf32>
    %139 = math.tanh %138 : vector<8x32xf32>
    %140 = arith.mulf %135, %139 : vector<8x32xf32>
    %141 = arith.index_cast %118 : i32 to index
    %c0_48 = arith.constant 0 : index
    %142 = vector.load %arg17[%141, %c0_48] : memref<64x32xf32, #tpu.memory_space<vmem>>, vector<8x32xf32>
    tpu.vector_store %arg17[%141, %c0_48], %140 {strides = array<i32>} : memref<64x32xf32, #tpu.memory_space<vmem>>, vector<8x32xf32>,
    %c5_i32 = arith.constant 5 : i32
    %c8_i32_49 = arith.constant 8 : i32
    %143 = arith.muli %c5_i32, %c8_i32_49 : i32
    %144 = tpu.assume_multiple %143, 8 : i32
    %145 = arith.index_cast %144 : i32 to index
    %c0_50 = arith.constant 0 : index
    %146 = vector.load %arg16[%145, %c0_50] : memref<64x128xf32, #tpu.memory_space<vmem>>, vector<8x128xf32>
    %cst_51 = arith.constant dense<0.000000e+00> : vector<8x128xf32>
    %147 = tpu.matmul %140, %10, %cst_51 {dimension_numbers = #tpu.dot_dimension_numbers<[1], [0], [0], [1], [0, 0, 1, 1], [], []>} : vector<8x32xf32>, vector<32x128xf32>, vector<8x128xf32> -> vector<8x128xf32>
    %148 = arith.addf %146, %147 : vector<8x128xf32>
    %149 = arith.negf %148 : vector<8x128xf32>
    %150 = math.exp %149 : vector<8x128xf32>
    %cst_52 = arith.constant 1.000000e+00 : f32
    %151 = vector.broadcast %cst_52 : f32 to vector<8x128xf32>
    %152 = arith.addf %151, %150 : vector<8x128xf32>
    %153 = arith.divf %151, %152 : vector<8x128xf32>
    %154 = vector.extract_strided_slice %153 {offsets = [0, 0], sizes = [8, 32], strides = [1, 1]} : vector<8x128xf32> to vector<8x32xf32>
    %155 = vector.extract_strided_slice %153 {offsets = [0, 32], sizes = [8, 32], strides = [1, 1]} : vector<8x128xf32> to vector<8x32xf32>
    %156 = vector.extract_strided_slice %153 {offsets = [0, 64], sizes = [8, 32], strides = [1, 1]} : vector<8x128xf32> to vector<8x32xf32>
    %cst_53 = arith.constant 2.000000e+00 : f32
    %157 = vector.broadcast %cst_53 : f32 to vector<8x32xf32>
    %158 = arith.mulf %157, %156 : vector<8x32xf32>
    %cst_54 = arith.constant 1.000000e+00 : f32
    %159 = vector.broadcast %cst_54 : f32 to vector<8x32xf32>
    %160 = arith.subf %158, %159 : vector<8x32xf32>
    %161 = vector.extract_strided_slice %153 {offsets = [0, 96], sizes = [8, 32], strides = [1, 1]} : vector<8x128xf32> to vector<8x32xf32>
    %162 = arith.mulf %155, %138 : vector<8x32xf32>
    %163 = arith.mulf %154, %160 : vector<8x32xf32>
    %164 = arith.addf %162, %163 : vector<8x32xf32>
    %165 = math.tanh %164 : vector<8x32xf32>
    %166 = arith.mulf %161, %165 : vector<8x32xf32>
    %167 = arith.index_cast %144 : i32 to index
    %c0_55 = arith.constant 0 : index
    %168 = vector.load %arg17[%167, %c0_55] : memref<64x32xf32, #tpu.memory_space<vmem>>, vector<8x32xf32>
    tpu.vector_store %arg17[%167, %c0_55], %166 {strides = array<i32>} : memref<64x32xf32, #tpu.memory_space<vmem>>, vector<8x32xf32>,
    %c6_i32 = arith.constant 6 : i32
    %c8_i32_56 = arith.constant 8 : i32
    %169 = arith.muli %c6_i32, %c8_i32_56 : i32
    %170 = tpu.assume_multiple %169, 8 : i32
    %171 = arith.index_cast %170 : i32 to index
    %c0_57 = arith.constant 0 : index
    %172 = vector.load %arg16[%171, %c0_57] : memref<64x128xf32, #tpu.memory_space<vmem>>, vector<8x128xf32>
    %cst_58 = arith.constant dense<0.000000e+00> : vector<8x128xf32>
    %173 = tpu.matmul %166, %10, %cst_58 {dimension_numbers = #tpu.dot_dimension_numbers<[1], [0], [0], [1], [0, 0, 1, 1], [], []>} : vector<8x32xf32>, vector<32x128xf32>, vector<8x128xf32> -> vector<8x128xf32>
    %174 = arith.addf %172, %173 : vector<8x128xf32>
    %175 = arith.negf %174 : vector<8x128xf32>
    %176 = math.exp %175 : vector<8x128xf32>
    %cst_59 = arith.constant 1.000000e+00 : f32
    %177 = vector.broadcast %cst_59 : f32 to vector<8x128xf32>
    %178 = arith.addf %177, %176 : vector<8x128xf32>
    %179 = arith.divf %177, %178 : vector<8x128xf32>
    %180 = vector.extract_strided_slice %179 {offsets = [0, 0], sizes = [8, 32], strides = [1, 1]} : vector<8x128xf32> to vector<8x32xf32>
    %181 = vector.extract_strided_slice %179 {offsets = [0, 32], sizes = [8, 32], strides = [1, 1]} : vector<8x128xf32> to vector<8x32xf32>
    %182 = vector.extract_strided_slice %179 {offsets = [0, 64], sizes = [8, 32], strides = [1, 1]} : vector<8x128xf32> to vector<8x32xf32>
    %cst_60 = arith.constant 2.000000e+00 : f32
    %183 = vector.broadcast %cst_60 : f32 to vector<8x32xf32>
    %184 = arith.mulf %183, %182 : vector<8x32xf32>
    %cst_61 = arith.constant 1.000000e+00 : f32
    %185 = vector.broadcast %cst_61 : f32 to vector<8x32xf32>
    %186 = arith.subf %184, %185 : vector<8x32xf32>
    %187 = vector.extract_strided_slice %179 {offsets = [0, 96], sizes = [8, 32], strides = [1, 1]} : vector<8x128xf32> to vector<8x32xf32>
    %188 = arith.mulf %181, %164 : vector<8x32xf32>
    %189 = arith.mulf %180, %186 : vector<8x32xf32>
    %190 = arith.addf %188, %189 : vector<8x32xf32>
    %191 = math.tanh %190 : vector<8x32xf32>
    %192 = arith.mulf %187, %191 : vector<8x32xf32>
    %193 = arith.index_cast %170 : i32 to index
    %c0_62 = arith.constant 0 : index
    %194 = vector.load %arg17[%193, %c0_62] : memref<64x32xf32, #tpu.memory_space<vmem>>, vector<8x32xf32>
    tpu.vector_store %arg17[%193, %c0_62], %192 {strides = array<i32>} : memref<64x32xf32, #tpu.memory_space<vmem>>, vector<8x32xf32>,
    %c7_i32 = arith.constant 7 : i32
    %c8_i32_63 = arith.constant 8 : i32
    %195 = arith.muli %c7_i32, %c8_i32_63 : i32
    %196 = tpu.assume_multiple %195, 8 : i32
    %197 = arith.index_cast %196 : i32 to index
    %c0_64 = arith.constant 0 : index
    %198 = vector.load %arg16[%197, %c0_64] : memref<64x128xf32, #tpu.memory_space<vmem>>, vector<8x128xf32>
    %cst_65 = arith.constant dense<0.000000e+00> : vector<8x128xf32>
    %199 = tpu.matmul %192, %10, %cst_65 {dimension_numbers = #tpu.dot_dimension_numbers<[1], [0], [0], [1], [0, 0, 1, 1], [], []>} : vector<8x32xf32>, vector<32x128xf32>, vector<8x128xf32> -> vector<8x128xf32>
    %200 = arith.addf %198, %199 : vector<8x128xf32>
    %201 = arith.negf %200 : vector<8x128xf32>
    %202 = math.exp %201 : vector<8x128xf32>
    %cst_66 = arith.constant 1.000000e+00 : f32
    %203 = vector.broadcast %cst_66 : f32 to vector<8x128xf32>
    %204 = arith.addf %203, %202 : vector<8x128xf32>
    %205 = arith.divf %203, %204 : vector<8x128xf32>
    %206 = vector.extract_strided_slice %205 {offsets = [0, 0], sizes = [8, 32], strides = [1, 1]} : vector<8x128xf32> to vector<8x32xf32>
    %207 = vector.extract_strided_slice %205 {offsets = [0, 32], sizes = [8, 32], strides = [1, 1]} : vector<8x128xf32> to vector<8x32xf32>
    %208 = vector.extract_strided_slice %205 {offsets = [0, 64], sizes = [8, 32], strides = [1, 1]} : vector<8x128xf32> to vector<8x32xf32>
    %cst_67 = arith.constant 2.000000e+00 : f32
    %209 = vector.broadcast %cst_67 : f32 to vector<8x32xf32>
    %210 = arith.mulf %209, %208 : vector<8x32xf32>
    %cst_68 = arith.constant 1.000000e+00 : f32
    %211 = vector.broadcast %cst_68 : f32 to vector<8x32xf32>
    %212 = arith.subf %210, %211 : vector<8x32xf32>
    %213 = vector.extract_strided_slice %205 {offsets = [0, 96], sizes = [8, 32], strides = [1, 1]} : vector<8x128xf32> to vector<8x32xf32>
    %214 = arith.mulf %207, %190 : vector<8x32xf32>
    %215 = arith.mulf %206, %212 : vector<8x32xf32>
    %216 = arith.addf %214, %215 : vector<8x32xf32>
    %217 = math.tanh %216 : vector<8x32xf32>
    %218 = arith.mulf %213, %217 : vector<8x32xf32>
    %219 = arith.index_cast %196 : i32 to index
    %c0_69 = arith.constant 0 : index
    %220 = vector.load %arg17[%219, %c0_69] : memref<64x32xf32, #tpu.memory_space<vmem>>, vector<8x32xf32>
    tpu.vector_store %arg17[%219, %c0_69], %218 {strides = array<i32>} : memref<64x32xf32, #tpu.memory_space<vmem>>, vector<8x32xf32>,
    %c8_i32_70 = arith.constant 8 : i32
    %c0_71 = arith.constant 0 : index
    %c0_72 = arith.constant 0 : index
    %221 = vector.load %arg12[%c0_71, %c0_72] : memref<8x32xf32, #tpu.memory_space<vmem>>, vector<8x32xf32>
    tpu.vector_store %arg12[%c0_71, %c0_72], %218 {strides = array<i32>} : memref<8x32xf32, #tpu.memory_space<vmem>>, vector<8x32xf32>,
    %c0_73 = arith.constant 0 : index
    %c0_74 = arith.constant 0 : index
    %222 = vector.load %arg13[%c0_73, %c0_74] : memref<8x32xf32, #tpu.memory_space<vmem>>, vector<8x32xf32>
    tpu.vector_store %arg13[%c0_73, %c0_74], %216 {strides = array<i32>} : memref<8x32xf32, #tpu.memory_space<vmem>>, vector<8x32xf32>,
    %c0_75 = arith.constant 0 : index
    %c0_76 = arith.constant 0 : index
    %223 = vector.load %arg17[%c0_75, %c0_76] : memref<64x32xf32, #tpu.memory_space<vmem>>, vector<64x32xf32>
    %c0_77 = arith.constant 0 : index
    %c0_78 = arith.constant 0 : index
    %224 = vector.load %arg6[%c0_77, %c0_78] : memref<32x128xf32, #tpu.memory_space<vmem>>, vector<32x128xf32>
    %cst_79 = arith.constant dense<0.000000e+00> : vector<64x128xf32>
    %225 = tpu.matmul %223, %224, %cst_79 {dimension_numbers = #tpu.dot_dimension_numbers<[1], [0], [0], [1], [0, 0, 1, 1], [], []>} : vector<64x32xf32>, vector<32x128xf32>, vector<64x128xf32> -> vector<64x128xf32>
    %c0_80 = arith.constant 0 : index
    %c0_81 = arith.constant 0 : index
    %226 = vector.load %arg8[%c0_80, %c0_81] : memref<1x128xf32, #tpu.memory_space<vmem>>, vector<1x128xf32>
    %227 = vector.broadcast %226 : vector<1x128xf32> to vector<64x128xf32>
    %228 = arith.addf %225, %227 : vector<64x128xf32>
    %c0_82 = arith.constant 0 : index
    %c0_83 = arith.constant 0 : index
    %229 = vector.load %arg16[%c0_82, %c0_83] : memref<64x128xf32, #tpu.memory_space<vmem>>, vector<64x128xf32>
    tpu.vector_store %arg16[%c0_82, %c0_83], %228 {strides = array<i32>} : memref<64x128xf32, #tpu.memory_space<vmem>>, vector<64x128xf32>,
    %c0_84 = arith.constant 0 : index
    %c0_85 = arith.constant 0 : index
    %230 = vector.load %arg7[%c0_84, %c0_85] : memref<32x128xf32, #tpu.memory_space<vmem>>, vector<32x128xf32>
    %c0_86 = arith.constant 0 : index
    %c0_87 = arith.constant 0 : index
    %231 = vector.load %arg14[%c0_86, %c0_87] : memref<8x32xf32, #tpu.memory_space<vmem>>, vector<8x32xf32>
    %c0_88 = arith.constant 0 : index
    %c0_89 = arith.constant 0 : index
    %232 = vector.load %arg15[%c0_88, %c0_89] : memref<8x32xf32, #tpu.memory_space<vmem>>, vector<8x32xf32>
    %c0_i32_90 = arith.constant 0 : i32
    %c8_i32_91 = arith.constant 8 : i32
    %233 = arith.muli %c0_i32_90, %c8_i32_91 : i32
    %234 = tpu.assume_multiple %233, 8 : i32
    %235 = arith.index_cast %234 : i32 to index
    %c0_92 = arith.constant 0 : index
    %236 = vector.load %arg16[%235, %c0_92] : memref<64x128xf32, #tpu.memory_space<vmem>>, vector<8x128xf32>
    %cst_93 = arith.constant dense<0.000000e+00> : vector<8x128xf32>
    %237 = tpu.matmul %231, %230, %cst_93 {dimension_numbers = #tpu.dot_dimension_numbers<[1], [0], [0], [1], [0, 0, 1, 1], [], []>} : vector<8x32xf32>, vector<32x128xf32>, vector<8x128xf32> -> vector<8x128xf32>
    %238 = arith.addf %236, %237 : vector<8x128xf32>
    %239 = arith.negf %238 : vector<8x128xf32>
    %240 = math.exp %239 : vector<8x128xf32>
    %cst_94 = arith.constant 1.000000e+00 : f32
    %241 = vector.broadcast %cst_94 : f32 to vector<8x128xf32>
    %242 = arith.addf %241, %240 : vector<8x128xf32>
    %243 = arith.divf %241, %242 : vector<8x128xf32>
    %244 = vector.extract_strided_slice %243 {offsets = [0, 0], sizes = [8, 32], strides = [1, 1]} : vector<8x128xf32> to vector<8x32xf32>
    %245 = vector.extract_strided_slice %243 {offsets = [0, 32], sizes = [8, 32], strides = [1, 1]} : vector<8x128xf32> to vector<8x32xf32>
    %246 = vector.extract_strided_slice %243 {offsets = [0, 64], sizes = [8, 32], strides = [1, 1]} : vector<8x128xf32> to vector<8x32xf32>
    %cst_95 = arith.constant 2.000000e+00 : f32
    %247 = vector.broadcast %cst_95 : f32 to vector<8x32xf32>
    %248 = arith.mulf %247, %246 : vector<8x32xf32>
    %cst_96 = arith.constant 1.000000e+00 : f32
    %249 = vector.broadcast %cst_96 : f32 to vector<8x32xf32>
    %250 = arith.subf %248, %249 : vector<8x32xf32>
    %251 = vector.extract_strided_slice %243 {offsets = [0, 96], sizes = [8, 32], strides = [1, 1]} : vector<8x128xf32> to vector<8x32xf32>
    %252 = arith.mulf %245, %232 : vector<8x32xf32>
    %253 = arith.mulf %244, %250 : vector<8x32xf32>
    %254 = arith.addf %252, %253 : vector<8x32xf32>
    %255 = math.tanh %254 : vector<8x32xf32>
    %256 = arith.mulf %251, %255 : vector<8x32xf32>
    %257 = arith.index_cast %234 : i32 to index
    %c0_97 = arith.constant 0 : index
    %258 = vector.load %arg17[%257, %c0_97] : memref<64x32xf32, #tpu.memory_space<vmem>>, vector<8x32xf32>
    tpu.vector_store %arg17[%257, %c0_97], %256 {strides = array<i32>} : memref<64x32xf32, #tpu.memory_space<vmem>>, vector<8x32xf32>,
    %c1_i32_98 = arith.constant 1 : i32
    %c8_i32_99 = arith.constant 8 : i32
    %259 = arith.muli %c1_i32_98, %c8_i32_99 : i32
    %260 = tpu.assume_multiple %259, 8 : i32
    %261 = arith.index_cast %260 : i32 to index
    %c0_100 = arith.constant 0 : index
    %262 = vector.load %arg16[%261, %c0_100] : memref<64x128xf32, #tpu.memory_space<vmem>>, vector<8x128xf32>
    %cst_101 = arith.constant dense<0.000000e+00> : vector<8x128xf32>
    %263 = tpu.matmul %256, %230, %cst_101 {dimension_numbers = #tpu.dot_dimension_numbers<[1], [0], [0], [1], [0, 0, 1, 1], [], []>} : vector<8x32xf32>, vector<32x128xf32>, vector<8x128xf32> -> vector<8x128xf32>
    %264 = arith.addf %262, %263 : vector<8x128xf32>
    %265 = arith.negf %264 : vector<8x128xf32>
    %266 = math.exp %265 : vector<8x128xf32>
    %cst_102 = arith.constant 1.000000e+00 : f32
    %267 = vector.broadcast %cst_102 : f32 to vector<8x128xf32>
    %268 = arith.addf %267, %266 : vector<8x128xf32>
    %269 = arith.divf %267, %268 : vector<8x128xf32>
    %270 = vector.extract_strided_slice %269 {offsets = [0, 0], sizes = [8, 32], strides = [1, 1]} : vector<8x128xf32> to vector<8x32xf32>
    %271 = vector.extract_strided_slice %269 {offsets = [0, 32], sizes = [8, 32], strides = [1, 1]} : vector<8x128xf32> to vector<8x32xf32>
    %272 = vector.extract_strided_slice %269 {offsets = [0, 64], sizes = [8, 32], strides = [1, 1]} : vector<8x128xf32> to vector<8x32xf32>
    %cst_103 = arith.constant 2.000000e+00 : f32
    %273 = vector.broadcast %cst_103 : f32 to vector<8x32xf32>
    %274 = arith.mulf %273, %272 : vector<8x32xf32>
    %cst_104 = arith.constant 1.000000e+00 : f32
    %275 = vector.broadcast %cst_104 : f32 to vector<8x32xf32>
    %276 = arith.subf %274, %275 : vector<8x32xf32>
    %277 = vector.extract_strided_slice %269 {offsets = [0, 96], sizes = [8, 32], strides = [1, 1]} : vector<8x128xf32> to vector<8x32xf32>
    %278 = arith.mulf %271, %254 : vector<8x32xf32>
    %279 = arith.mulf %270, %276 : vector<8x32xf32>
    %280 = arith.addf %278, %279 : vector<8x32xf32>
    %281 = math.tanh %280 : vector<8x32xf32>
    %282 = arith.mulf %277, %281 : vector<8x32xf32>
    %283 = arith.index_cast %260 : i32 to index
    %c0_105 = arith.constant 0 : index
    %284 = vector.load %arg17[%283, %c0_105] : memref<64x32xf32, #tpu.memory_space<vmem>>, vector<8x32xf32>
    tpu.vector_store %arg17[%283, %c0_105], %282 {strides = array<i32>} : memref<64x32xf32, #tpu.memory_space<vmem>>, vector<8x32xf32>,
    %c2_i32_106 = arith.constant 2 : i32
    %c8_i32_107 = arith.constant 8 : i32
    %285 = arith.muli %c2_i32_106, %c8_i32_107 : i32
    %286 = tpu.assume_multiple %285, 8 : i32
    %287 = arith.index_cast %286 : i32 to index
    %c0_108 = arith.constant 0 : index
    %288 = vector.load %arg16[%287, %c0_108] : memref<64x128xf32, #tpu.memory_space<vmem>>, vector<8x128xf32>
    %cst_109 = arith.constant dense<0.000000e+00> : vector<8x128xf32>
    %289 = tpu.matmul %282, %230, %cst_109 {dimension_numbers = #tpu.dot_dimension_numbers<[1], [0], [0], [1], [0, 0, 1, 1], [], []>} : vector<8x32xf32>, vector<32x128xf32>, vector<8x128xf32> -> vector<8x128xf32>
    %290 = arith.addf %288, %289 : vector<8x128xf32>
    %291 = arith.negf %290 : vector<8x128xf32>
    %292 = math.exp %291 : vector<8x128xf32>
    %cst_110 = arith.constant 1.000000e+00 : f32
    %293 = vector.broadcast %cst_110 : f32 to vector<8x128xf32>
    %294 = arith.addf %293, %292 : vector<8x128xf32>
    %295 = arith.divf %293, %294 : vector<8x128xf32>
    %296 = vector.extract_strided_slice %295 {offsets = [0, 0], sizes = [8, 32], strides = [1, 1]} : vector<8x128xf32> to vector<8x32xf32>
    %297 = vector.extract_strided_slice %295 {offsets = [0, 32], sizes = [8, 32], strides = [1, 1]} : vector<8x128xf32> to vector<8x32xf32>
    %298 = vector.extract_strided_slice %295 {offsets = [0, 64], sizes = [8, 32], strides = [1, 1]} : vector<8x128xf32> to vector<8x32xf32>
    %cst_111 = arith.constant 2.000000e+00 : f32
    %299 = vector.broadcast %cst_111 : f32 to vector<8x32xf32>
    %300 = arith.mulf %299, %298 : vector<8x32xf32>
    %cst_112 = arith.constant 1.000000e+00 : f32
    %301 = vector.broadcast %cst_112 : f32 to vector<8x32xf32>
    %302 = arith.subf %300, %301 : vector<8x32xf32>
    %303 = vector.extract_strided_slice %295 {offsets = [0, 96], sizes = [8, 32], strides = [1, 1]} : vector<8x128xf32> to vector<8x32xf32>
    %304 = arith.mulf %297, %280 : vector<8x32xf32>
    %305 = arith.mulf %296, %302 : vector<8x32xf32>
    %306 = arith.addf %304, %305 : vector<8x32xf32>
    %307 = math.tanh %306 : vector<8x32xf32>
    %308 = arith.mulf %303, %307 : vector<8x32xf32>
    %309 = arith.index_cast %286 : i32 to index
    %c0_113 = arith.constant 0 : index
    %310 = vector.load %arg17[%309, %c0_113] : memref<64x32xf32, #tpu.memory_space<vmem>>, vector<8x32xf32>
    tpu.vector_store %arg17[%309, %c0_113], %308 {strides = array<i32>} : memref<64x32xf32, #tpu.memory_space<vmem>>, vector<8x32xf32>,
    %c3_i32_114 = arith.constant 3 : i32
    %c8_i32_115 = arith.constant 8 : i32
    %311 = arith.muli %c3_i32_114, %c8_i32_115 : i32
    %312 = tpu.assume_multiple %311, 8 : i32
    %313 = arith.index_cast %312 : i32 to index
    %c0_116 = arith.constant 0 : index
    %314 = vector.load %arg16[%313, %c0_116] : memref<64x128xf32, #tpu.memory_space<vmem>>, vector<8x128xf32>
    %cst_117 = arith.constant dense<0.000000e+00> : vector<8x128xf32>
    %315 = tpu.matmul %308, %230, %cst_117 {dimension_numbers = #tpu.dot_dimension_numbers<[1], [0], [0], [1], [0, 0, 1, 1], [], []>} : vector<8x32xf32>, vector<32x128xf32>, vector<8x128xf32> -> vector<8x128xf32>
    %316 = arith.addf %314, %315 : vector<8x128xf32>
    %317 = arith.negf %316 : vector<8x128xf32>
    %318 = math.exp %317 : vector<8x128xf32>
    %cst_118 = arith.constant 1.000000e+00 : f32
    %319 = vector.broadcast %cst_118 : f32 to vector<8x128xf32>
    %320 = arith.addf %319, %318 : vector<8x128xf32>
    %321 = arith.divf %319, %320 : vector<8x128xf32>
    %322 = vector.extract_strided_slice %321 {offsets = [0, 0], sizes = [8, 32], strides = [1, 1]} : vector<8x128xf32> to vector<8x32xf32>
    %323 = vector.extract_strided_slice %321 {offsets = [0, 32], sizes = [8, 32], strides = [1, 1]} : vector<8x128xf32> to vector<8x32xf32>
    %324 = vector.extract_strided_slice %321 {offsets = [0, 64], sizes = [8, 32], strides = [1, 1]} : vector<8x128xf32> to vector<8x32xf32>
    %cst_119 = arith.constant 2.000000e+00 : f32
    %325 = vector.broadcast %cst_119 : f32 to vector<8x32xf32>
    %326 = arith.mulf %325, %324 : vector<8x32xf32>
    %cst_120 = arith.constant 1.000000e+00 : f32
    %327 = vector.broadcast %cst_120 : f32 to vector<8x32xf32>
    %328 = arith.subf %326, %327 : vector<8x32xf32>
    %329 = vector.extract_strided_slice %321 {offsets = [0, 96], sizes = [8, 32], strides = [1, 1]} : vector<8x128xf32> to vector<8x32xf32>
    %330 = arith.mulf %323, %306 : vector<8x32xf32>
    %331 = arith.mulf %322, %328 : vector<8x32xf32>
    %332 = arith.addf %330, %331 : vector<8x32xf32>
    %333 = math.tanh %332 : vector<8x32xf32>
    %334 = arith.mulf %329, %333 : vector<8x32xf32>
    %335 = arith.index_cast %312 : i32 to index
    %c0_121 = arith.constant 0 : index
    %336 = vector.load %arg17[%335, %c0_121] : memref<64x32xf32, #tpu.memory_space<vmem>>, vector<8x32xf32>
    tpu.vector_store %arg17[%335, %c0_121], %334 {strides = array<i32>} : memref<64x32xf32, #tpu.memory_space<vmem>>, vector<8x32xf32>,
    %c4_i32_122 = arith.constant 4 : i32
    %c8_i32_123 = arith.constant 8 : i32
    %337 = arith.muli %c4_i32_122, %c8_i32_123 : i32
    %338 = tpu.assume_multiple %337, 8 : i32
    %339 = arith.index_cast %338 : i32 to index
    %c0_124 = arith.constant 0 : index
    %340 = vector.load %arg16[%339, %c0_124] : memref<64x128xf32, #tpu.memory_space<vmem>>, vector<8x128xf32>
    %cst_125 = arith.constant dense<0.000000e+00> : vector<8x128xf32>
    %341 = tpu.matmul %334, %230, %cst_125 {dimension_numbers = #tpu.dot_dimension_numbers<[1], [0], [0], [1], [0, 0, 1, 1], [], []>} : vector<8x32xf32>, vector<32x128xf32>, vector<8x128xf32> -> vector<8x128xf32>
    %342 = arith.addf %340, %341 : vector<8x128xf32>
    %343 = arith.negf %342 : vector<8x128xf32>
    %344 = math.exp %343 : vector<8x128xf32>
    %cst_126 = arith.constant 1.000000e+00 : f32
    %345 = vector.broadcast %cst_126 : f32 to vector<8x128xf32>
    %346 = arith.addf %345, %344 : vector<8x128xf32>
    %347 = arith.divf %345, %346 : vector<8x128xf32>
    %348 = vector.extract_strided_slice %347 {offsets = [0, 0], sizes = [8, 32], strides = [1, 1]} : vector<8x128xf32> to vector<8x32xf32>
    %349 = vector.extract_strided_slice %347 {offsets = [0, 32], sizes = [8, 32], strides = [1, 1]} : vector<8x128xf32> to vector<8x32xf32>
    %350 = vector.extract_strided_slice %347 {offsets = [0, 64], sizes = [8, 32], strides = [1, 1]} : vector<8x128xf32> to vector<8x32xf32>
    %cst_127 = arith.constant 2.000000e+00 : f32
    %351 = vector.broadcast %cst_127 : f32 to vector<8x32xf32>
    %352 = arith.mulf %351, %350 : vector<8x32xf32>
    %cst_128 = arith.constant 1.000000e+00 : f32
    %353 = vector.broadcast %cst_128 : f32 to vector<8x32xf32>
    %354 = arith.subf %352, %353 : vector<8x32xf32>
    %355 = vector.extract_strided_slice %347 {offsets = [0, 96], sizes = [8, 32], strides = [1, 1]} : vector<8x128xf32> to vector<8x32xf32>
    %356 = arith.mulf %349, %332 : vector<8x32xf32>
    %357 = arith.mulf %348, %354 : vector<8x32xf32>
    %358 = arith.addf %356, %357 : vector<8x32xf32>
    %359 = math.tanh %358 : vector<8x32xf32>
    %360 = arith.mulf %355, %359 : vector<8x32xf32>
    %361 = arith.index_cast %338 : i32 to index
    %c0_129 = arith.constant 0 : index
    %362 = vector.load %arg17[%361, %c0_129] : memref<64x32xf32, #tpu.memory_space<vmem>>, vector<8x32xf32>
    tpu.vector_store %arg17[%361, %c0_129], %360 {strides = array<i32>} : memref<64x32xf32, #tpu.memory_space<vmem>>, vector<8x32xf32>,
    %c5_i32_130 = arith.constant 5 : i32
    %c8_i32_131 = arith.constant 8 : i32
    %363 = arith.muli %c5_i32_130, %c8_i32_131 : i32
    %364 = tpu.assume_multiple %363, 8 : i32
    %365 = arith.index_cast %364 : i32 to index
    %c0_132 = arith.constant 0 : index
    %366 = vector.load %arg16[%365, %c0_132] : memref<64x128xf32, #tpu.memory_space<vmem>>, vector<8x128xf32>
    %cst_133 = arith.constant dense<0.000000e+00> : vector<8x128xf32>
    %367 = tpu.matmul %360, %230, %cst_133 {dimension_numbers = #tpu.dot_dimension_numbers<[1], [0], [0], [1], [0, 0, 1, 1], [], []>} : vector<8x32xf32>, vector<32x128xf32>, vector<8x128xf32> -> vector<8x128xf32>
    %368 = arith.addf %366, %367 : vector<8x128xf32>
    %369 = arith.negf %368 : vector<8x128xf32>
    %370 = math.exp %369 : vector<8x128xf32>
    %cst_134 = arith.constant 1.000000e+00 : f32
    %371 = vector.broadcast %cst_134 : f32 to vector<8x128xf32>
    %372 = arith.addf %371, %370 : vector<8x128xf32>
    %373 = arith.divf %371, %372 : vector<8x128xf32>
    %374 = vector.extract_strided_slice %373 {offsets = [0, 0], sizes = [8, 32], strides = [1, 1]} : vector<8x128xf32> to vector<8x32xf32>
    %375 = vector.extract_strided_slice %373 {offsets = [0, 32], sizes = [8, 32], strides = [1, 1]} : vector<8x128xf32> to vector<8x32xf32>
    %376 = vector.extract_strided_slice %373 {offsets = [0, 64], sizes = [8, 32], strides = [1, 1]} : vector<8x128xf32> to vector<8x32xf32>
    %cst_135 = arith.constant 2.000000e+00 : f32
    %377 = vector.broadcast %cst_135 : f32 to vector<8x32xf32>
    %378 = arith.mulf %377, %376 : vector<8x32xf32>
    %cst_136 = arith.constant 1.000000e+00 : f32
    %379 = vector.broadcast %cst_136 : f32 to vector<8x32xf32>
    %380 = arith.subf %378, %379 : vector<8x32xf32>
    %381 = vector.extract_strided_slice %373 {offsets = [0, 96], sizes = [8, 32], strides = [1, 1]} : vector<8x128xf32> to vector<8x32xf32>
    %382 = arith.mulf %375, %358 : vector<8x32xf32>
    %383 = arith.mulf %374, %380 : vector<8x32xf32>
    %384 = arith.addf %382, %383 : vector<8x32xf32>
    %385 = math.tanh %384 : vector<8x32xf32>
    %386 = arith.mulf %381, %385 : vector<8x32xf32>
    %387 = arith.index_cast %364 : i32 to index
    %c0_137 = arith.constant 0 : index
    %388 = vector.load %arg17[%387, %c0_137] : memref<64x32xf32, #tpu.memory_space<vmem>>, vector<8x32xf32>
    tpu.vector_store %arg17[%387, %c0_137], %386 {strides = array<i32>} : memref<64x32xf32, #tpu.memory_space<vmem>>, vector<8x32xf32>,
    %c6_i32_138 = arith.constant 6 : i32
    %c8_i32_139 = arith.constant 8 : i32
    %389 = arith.muli %c6_i32_138, %c8_i32_139 : i32
    %390 = tpu.assume_multiple %389, 8 : i32
    %391 = arith.index_cast %390 : i32 to index
    %c0_140 = arith.constant 0 : index
    %392 = vector.load %arg16[%391, %c0_140] : memref<64x128xf32, #tpu.memory_space<vmem>>, vector<8x128xf32>
    %cst_141 = arith.constant dense<0.000000e+00> : vector<8x128xf32>
    %393 = tpu.matmul %386, %230, %cst_141 {dimension_numbers = #tpu.dot_dimension_numbers<[1], [0], [0], [1], [0, 0, 1, 1], [], []>} : vector<8x32xf32>, vector<32x128xf32>, vector<8x128xf32> -> vector<8x128xf32>
    %394 = arith.addf %392, %393 : vector<8x128xf32>
    %395 = arith.negf %394 : vector<8x128xf32>
    %396 = math.exp %395 : vector<8x128xf32>
    %cst_142 = arith.constant 1.000000e+00 : f32
    %397 = vector.broadcast %cst_142 : f32 to vector<8x128xf32>
    %398 = arith.addf %397, %396 : vector<8x128xf32>
    %399 = arith.divf %397, %398 : vector<8x128xf32>
    %400 = vector.extract_strided_slice %399 {offsets = [0, 0], sizes = [8, 32], strides = [1, 1]} : vector<8x128xf32> to vector<8x32xf32>
    %401 = vector.extract_strided_slice %399 {offsets = [0, 32], sizes = [8, 32], strides = [1, 1]} : vector<8x128xf32> to vector<8x32xf32>
    %402 = vector.extract_strided_slice %399 {offsets = [0, 64], sizes = [8, 32], strides = [1, 1]} : vector<8x128xf32> to vector<8x32xf32>
    %cst_143 = arith.constant 2.000000e+00 : f32
    %403 = vector.broadcast %cst_143 : f32 to vector<8x32xf32>
    %404 = arith.mulf %403, %402 : vector<8x32xf32>
    %cst_144 = arith.constant 1.000000e+00 : f32
    %405 = vector.broadcast %cst_144 : f32 to vector<8x32xf32>
    %406 = arith.subf %404, %405 : vector<8x32xf32>
    %407 = vector.extract_strided_slice %399 {offsets = [0, 96], sizes = [8, 32], strides = [1, 1]} : vector<8x128xf32> to vector<8x32xf32>
    %408 = arith.mulf %401, %384 : vector<8x32xf32>
    %409 = arith.mulf %400, %406 : vector<8x32xf32>
    %410 = arith.addf %408, %409 : vector<8x32xf32>
    %411 = math.tanh %410 : vector<8x32xf32>
    %412 = arith.mulf %407, %411 : vector<8x32xf32>
    %413 = arith.index_cast %390 : i32 to index
    %c0_145 = arith.constant 0 : index
    %414 = vector.load %arg17[%413, %c0_145] : memref<64x32xf32, #tpu.memory_space<vmem>>, vector<8x32xf32>
    tpu.vector_store %arg17[%413, %c0_145], %412 {strides = array<i32>} : memref<64x32xf32, #tpu.memory_space<vmem>>, vector<8x32xf32>,
    %c7_i32_146 = arith.constant 7 : i32
    %c8_i32_147 = arith.constant 8 : i32
    %415 = arith.muli %c7_i32_146, %c8_i32_147 : i32
    %416 = tpu.assume_multiple %415, 8 : i32
    %417 = arith.index_cast %416 : i32 to index
    %c0_148 = arith.constant 0 : index
    %418 = vector.load %arg16[%417, %c0_148] : memref<64x128xf32, #tpu.memory_space<vmem>>, vector<8x128xf32>
    %cst_149 = arith.constant dense<0.000000e+00> : vector<8x128xf32>
    %419 = tpu.matmul %412, %230, %cst_149 {dimension_numbers = #tpu.dot_dimension_numbers<[1], [0], [0], [1], [0, 0, 1, 1], [], []>} : vector<8x32xf32>, vector<32x128xf32>, vector<8x128xf32> -> vector<8x128xf32>
    %420 = arith.addf %418, %419 : vector<8x128xf32>
    %421 = arith.negf %420 : vector<8x128xf32>
    %422 = math.exp %421 : vector<8x128xf32>
    %cst_150 = arith.constant 1.000000e+00 : f32
    %423 = vector.broadcast %cst_150 : f32 to vector<8x128xf32>
    %424 = arith.addf %423, %422 : vector<8x128xf32>
    %425 = arith.divf %423, %424 : vector<8x128xf32>
    %426 = vector.extract_strided_slice %425 {offsets = [0, 0], sizes = [8, 32], strides = [1, 1]} : vector<8x128xf32> to vector<8x32xf32>
    %427 = vector.extract_strided_slice %425 {offsets = [0, 32], sizes = [8, 32], strides = [1, 1]} : vector<8x128xf32> to vector<8x32xf32>
    %428 = vector.extract_strided_slice %425 {offsets = [0, 64], sizes = [8, 32], strides = [1, 1]} : vector<8x128xf32> to vector<8x32xf32>
    %cst_151 = arith.constant 2.000000e+00 : f32
    %429 = vector.broadcast %cst_151 : f32 to vector<8x32xf32>
    %430 = arith.mulf %429, %428 : vector<8x32xf32>
    %cst_152 = arith.constant 1.000000e+00 : f32
    %431 = vector.broadcast %cst_152 : f32 to vector<8x32xf32>
    %432 = arith.subf %430, %431 : vector<8x32xf32>
    %433 = vector.extract_strided_slice %425 {offsets = [0, 96], sizes = [8, 32], strides = [1, 1]} : vector<8x128xf32> to vector<8x32xf32>
    %434 = arith.mulf %427, %410 : vector<8x32xf32>
    %435 = arith.mulf %426, %432 : vector<8x32xf32>
    %436 = arith.addf %434, %435 : vector<8x32xf32>
    %437 = math.tanh %436 : vector<8x32xf32>
    %438 = arith.mulf %433, %437 : vector<8x32xf32>
    %439 = arith.index_cast %416 : i32 to index
    %c0_153 = arith.constant 0 : index
    %440 = vector.load %arg17[%439, %c0_153] : memref<64x32xf32, #tpu.memory_space<vmem>>, vector<8x32xf32>
    tpu.vector_store %arg17[%439, %c0_153], %438 {strides = array<i32>} : memref<64x32xf32, #tpu.memory_space<vmem>>, vector<8x32xf32>,
    %c8_i32_154 = arith.constant 8 : i32
    %c0_155 = arith.constant 0 : index
    %c0_156 = arith.constant 0 : index
    %441 = vector.load %arg14[%c0_155, %c0_156] : memref<8x32xf32, #tpu.memory_space<vmem>>, vector<8x32xf32>
    tpu.vector_store %arg14[%c0_155, %c0_156], %438 {strides = array<i32>} : memref<8x32xf32, #tpu.memory_space<vmem>>, vector<8x32xf32>,
    %c0_157 = arith.constant 0 : index
    %c0_158 = arith.constant 0 : index
    %442 = vector.load %arg15[%c0_157, %c0_158] : memref<8x32xf32, #tpu.memory_space<vmem>>, vector<8x32xf32>
    tpu.vector_store %arg15[%c0_157, %c0_158], %436 {strides = array<i32>} : memref<8x32xf32, #tpu.memory_space<vmem>>, vector<8x32xf32>,
    %c0_159 = arith.constant 0 : index
    %c0_160 = arith.constant 0 : index
    %443 = vector.load %arg17[%c0_159, %c0_160] : memref<64x32xf32, #tpu.memory_space<vmem>>, vector<64x32xf32>
    %c0_161 = arith.constant 0 : index
    %c0_162 = arith.constant 0 : index
    %444 = vector.load %arg9[%c0_161, %c0_162] : memref<32x16xf32, #tpu.memory_space<vmem>>, vector<32x16xf32>
    %cst_163 = arith.constant dense<0.000000e+00> : vector<64x16xf32>
    %445 = tpu.matmul %443, %444, %cst_163 {dimension_numbers = #tpu.dot_dimension_numbers<[1], [0], [0], [1], [0, 0, 1, 1], [], []>} : vector<64x32xf32>, vector<32x16xf32>, vector<64x16xf32> -> vector<64x16xf32>
    %c0_164 = arith.constant 0 : index
    %c0_165 = arith.constant 0 : index
    %446 = vector.load %arg10[%c0_164, %c0_165] : memref<1x16xf32, #tpu.memory_space<vmem>>, vector<1x16xf32>
    %447 = vector.broadcast %446 : vector<1x16xf32> to vector<64x16xf32>
    %448 = arith.addf %445, %447 : vector<64x16xf32>
    %c0_166 = arith.constant 0 : index
    %c0_167 = arith.constant 0 : index
    %449 = vector.load %arg11[%c0_166, %c0_167] : memref<64x16xf32, #tpu.memory_space<vmem>>, vector<64x16xf32>
    tpu.vector_store %arg11[%c0_166, %c0_167], %448 {strides = array<i32>} : memref<64x16xf32, #tpu.memory_space<vmem>>, vector<64x16xf32>,
    return
  }
  func.func @transform_0(%arg0: i32, %arg1: i32) -> (i32, i32) {
    %c1_i32 = arith.constant 1 : i32
    %0 = arith.muli %arg0, %c1_i32 : i32
    %1 = arith.addi %0, %arg1 : i32
    %c0_i32 = arith.constant 0 : i32
    %c0_i32_0 = arith.constant 0 : i32
    return %1, %c0_i32 : i32, i32
  }
  func.func @transform_1(%arg0: i32, %arg1: i32) -> (i32, i32) {
    %c0_i32 = arith.constant 0 : i32
    %c0_i32_0 = arith.constant 0 : i32
    %c0_i32_1 = arith.constant 0 : i32
    return %c0_i32, %c0_i32_0 : i32, i32
  }
  func.func @transform_2(%arg0: i32, %arg1: i32) -> (i32, i32) {
    %c0_i32 = arith.constant 0 : i32
    %c0_i32_0 = arith.constant 0 : i32
    %c0_i32_1 = arith.constant 0 : i32
    return %c0_i32, %c0_i32_0 : i32, i32
  }
  func.func @transform_3(%arg0: i32, %arg1: i32) -> (i32, i32) {
    %c0_i32 = arith.constant 0 : i32
    %c0_i32_0 = arith.constant 0 : i32
    %c0_i32_1 = arith.constant 0 : i32
    return %c0_i32, %c0_i32_0 : i32, i32
  }
  func.func @transform_4(%arg0: i32, %arg1: i32) -> (i32, i32) {
    %c0_i32 = arith.constant 0 : i32
    %c0_i32_0 = arith.constant 0 : i32
    %c0_i32_1 = arith.constant 0 : i32
    return %c0_i32, %c0_i32_0 : i32, i32
  }
  func.func @transform_5(%arg0: i32, %arg1: i32) -> (i32, i32) {
    %c0_i32 = arith.constant 0 : i32
    %c0_i32_0 = arith.constant 0 : i32
    %c0_i32_1 = arith.constant 0 : i32
    return %c0_i32, %c0_i32_0 : i32, i32
  }
  func.func @transform_6(%arg0: i32, %arg1: i32) -> (i32, i32) {
    %c0_i32 = arith.constant 0 : i32
    %c0_i32_0 = arith.constant 0 : i32
    %c0_i32_1 = arith.constant 0 : i32
    return %c0_i32, %c0_i32_0 : i32, i32
  }
  func.func @transform_7(%arg0: i32, %arg1: i32) -> (i32, i32) {
    %c0_i32 = arith.constant 0 : i32
    %c0_i32_0 = arith.constant 0 : i32
    %c0_i32_1 = arith.constant 0 : i32
    return %c0_i32, %c0_i32_0 : i32, i32
  }
  func.func @transform_8(%arg0: i32, %arg1: i32) -> (i32, i32) {
    %c0_i32 = arith.constant 0 : i32
    %c0_i32_0 = arith.constant 0 : i32
    %c0_i32_1 = arith.constant 0 : i32
    return %c0_i32, %c0_i32_0 : i32, i32
  }
  func.func @transform_9(%arg0: i32, %arg1: i32) -> (i32, i32) {
    %c1_i32 = arith.constant 1 : i32
    %0 = arith.muli %arg0, %c1_i32 : i32
    %1 = arith.addi %0, %arg1 : i32
    %c0_i32 = arith.constant 0 : i32
    %c0_i32_0 = arith.constant 0 : i32
    return %1, %c0_i32 : i32, i32
  }
}

</mosaic_0001>

<llo_original>
// kernel: single_rnn_forward.1
$region0: #{single_rnn_forward.1}
  #allocation0 [shape = 'u32[]', space=smem, size = 0x4, offset = 0x4, fixed_abs, tag = 'smem constant byte address 0x4 - core index']
  #allocation1 [shape = 'u32[72,128]{1,0:T(1,128)}', space=vmem, size = 0x9000, scoped, tag = 'internal scratch']
  #allocation2 [shape = 'f32[8,32]{1,0:T(8,128)}', space=vmem, size = 0x1000, scoped, tag = 'scratch operand']
  #allocation3 [shape = 'f32[8,32]{1,0:T(8,128)}', space=vmem, size = 0x1000, scoped, tag = 'scratch operand']
  #allocation4 [shape = 'f32[8,32]{1,0:T(8,128)}', space=vmem, size = 0x1000, scoped, tag = 'scratch operand']
  #allocation5 [shape = 'f32[8,32]{1,0:T(8,128)}', space=vmem, size = 0x1000, scoped, tag = 'scratch operand']
  #allocation6 [shape = 'f32[64,128]{1,0:T(8,128)}', space=vmem, size = 0x8000, scoped, tag = 'scratch operand']
  #allocation7 [shape = 'f32[64,32]{1,0:T(8,128)}', space=vmem, size = 0x8000, scoped, tag = 'scratch operand']
  %s0 = inlined_call_operand.vmem [shape: f32[64,16], index: 0, kind: input, shape index: {}]
  %s1 = inlined_call_operand.vmem [shape: f32[16,128], index: 1, kind: input, shape index: {}]
  %s2 = inlined_call_operand.vmem [shape: f32[32,128], index: 2, kind: input, shape index: {}]
  %s3 = inlined_call_operand.vmem [shape: f32[1,128], index: 3, kind: input, shape index: {}]
  %s4 = inlined_call_operand.vmem [shape: f32[32,128], index: 4, kind: input, shape index: {}]
  %s5 = inlined_call_operand.vmem [shape: f32[32,128], index: 5, kind: input, shape index: {}]
  %s6 = inlined_call_operand.vmem [shape: f32[1,128], index: 6, kind: input, shape index: {}]
  %s7 = inlined_call_operand.vmem [shape: f32[32,16], index: 7, kind: input, shape index: {}]
  %s8 = inlined_call_operand.vmem [shape: f32[1,16], index: 8, kind: input, shape index: {}]
  %s9 = inlined_call_operand.vmem [shape: f32[64,16], index: 9, kind: output, shape index: {}]
  %s10 = sld [smem:[#allocation0]]
  $region50: #{single_rnn_forward.1} parent=0
    _
  %s12 = ssub.s32 1, %s10
  %s13 = scalar_select 0, %s12, %s10
  // Predicated region
  $region2: #{single_rnn_forward.1} parent=0 // pred_check
    _
  $region3: #{single_rnn_forward.1} parent=0 // pred_check_branch
    %15 = sbr.rel (0) target = $region5
  $region4: #{single_rnn_forward.1} parent=0 // pred_region
    %s16 = sadd.s32 0, 0
    %s17 = smul.u32 8, %s16
    %p18 = scmp.lt.s32.totalorder %s17, 7
    %s19 = scalar_select %p18, %s17, 7
    %s20 = smul.addr %s19, 8
    %s21 = scalar_lea.vmem %s0, %s20
    %s22 = sadd.s32 0, 0
    %s23 = smul.u32 8, %s22
  $region5: #{single_rnn_forward.1} parent=0 // pred_fallthru
    _
  // Predicated region
  $region6: #{single_rnn_forward.1} parent=0 // pred_check
    _
  $region7: #{single_rnn_forward.1} parent=0 // pred_check_branch
    %25 = sbr.rel (0) target = $region9
  $region8: #{single_rnn_forward.1} parent=0 // pred_region
    _
  $region9: #{single_rnn_forward.1} parent=0 // pred_fallthru
    _
  // Predicated region
  $region10: #{single_rnn_forward.1} parent=0 // pred_check
    _
  $region11: #{single_rnn_forward.1} parent=0 // pred_check_branch
    %27 = sbr.rel (0) target = $region13
  $region12: #{single_rnn_forward.1} parent=0 // pred_region
    _
  $region13: #{single_rnn_forward.1} parent=0 // pred_fallthru
    _
  // Predicated region
  $region14: #{single_rnn_forward.1} parent=0 // pred_check
    _
  $region15: #{single_rnn_forward.1} parent=0 // pred_check_branch
    %29 = sbr.rel (0) target = $region17
  $region16: #{single_rnn_forward.1} parent=0 // pred_region
    _
  $region17: #{single_rnn_forward.1} parent=0 // pred_fallthru
    _
  // Predicated region
  $region18: #{single_rnn_forward.1} parent=0 // pred_check
    _
  $region19: #{single_rnn_forward.1} parent=0 // pred_check_branch
    %31 = sbr.rel (0) target = $region21
  $region20: #{single_rnn_forward.1} parent=0 // pred_region
    _
  $region21: #{single_rnn_forward.1} parent=0 // pred_fallthru
    _
  // Predicated region
  $region22: #{single_rnn_forward.1} parent=0 // pred_check
    _
  $region23: #{single_rnn_forward.1} parent=0 // pred_check_branch
    %33 = sbr.rel (0) target = $region25
  $region24: #{single_rnn_forward.1} parent=0 // pred_region
    _
  $region25: #{single_rnn_forward.1} parent=0 // pred_fallthru
    _
  // Predicated region
  $region26: #{single_rnn_forward.1} parent=0 // pred_check
    _
  $region27: #{single_rnn_forward.1} parent=0 // pred_check_branch
    %35 = sbr.rel (0) target = $region29
  $region28: #{single_rnn_forward.1} parent=0 // pred_region
    _
  $region29: #{single_rnn_forward.1} parent=0 // pred_fallthru
    _
  // Predicated region
  $region30: #{single_rnn_forward.1} parent=0 // pred_check
    _
  $region31: #{single_rnn_forward.1} parent=0 // pred_check_branch
    %37 = sbr.rel (0) target = $region33
  $region32: #{single_rnn_forward.1} parent=0 // pred_region
    _
  $region33: #{single_rnn_forward.1} parent=0 // pred_fallthru
    _
  // Predicated region
  $region34: #{single_rnn_forward.1} parent=0 // pred_check
    _
  $region35: #{single_rnn_forward.1} parent=0 // pred_check_branch
    %39 = sbr.rel (0) target = $region37
  $region36: #{single_rnn_forward.1} parent=0 // pred_region
    _
  $region37: #{single_rnn_forward.1} parent=0 // pred_fallthru
    _
  %s40 = sadd.s32 0, 0
  %s41 = smul.u32 8, %s40
  %p42 = scmp.lt.s32.totalorder %s41, 7
  %s43 = scalar_select %p42, %s41, 7
  %s44 = smul.addr %s43, 8
  %s45 = scalar_lea.vmem %s0, %s44
  %s46 = sadd.s32 0, 0
  %s47 = smul.u32 8, %s46
  %p48 = scmp.lt.s32.totalorder %s47, 7
  %s49 = scalar_select %p48, %s47, 7
  %s50 = smul.addr %s49, 8
  %s51 = scalar_lea.vmem %s9, %s50
  %s52 = sadd.s32 0, 0
  %s53 = smul.u32 8, %s52
  %p54 = scmp.lt.s32.totalorder %s53, 7
  %s55 = scalar_select %p54, %s53, 7
  %s56 = smul.addr %s55, 8
  %s57 = scalar_lea.vmem %s0, %s56
  %s58 = sadd.s32 0, 0
  %s59 = smul.u32 8, %s58
  %s60 = sadd.s32 0, 0
  %s61 = smul.u32 8, %s60
  %p62 = scmp.lt.s32.totalorder %s61, 7
  %s63 = scalar_select %p62, %s61, 7
  %s64 = smul.addr %s63, 8
  %s65 = scalar_lea.vmem %s9, %s64
  %s66 = sadd.s32 0, 0
  %s67 = smul.u32 8, %s66
  %p68 = scmp.eq.s32.totalorder 0, 0
  // Predicated region
  $region38: #{single_rnn_forward.1} parent=0 // pred_check
    %p69 = pneg %p68
  $region39: #{single_rnn_forward.1} parent=0 // pred_check_branch
    %71 = sbr.rel (%p69) target = $region41
  $region40: #{single_rnn_forward.1} parent=0 // pred_region
    %vm72 = vcmask 261120
    %73 = vst.msk [vmem:[#allocation2] sm:$0xff] %vm72, 0.0
    %74 = vst.msk [vmem:[#allocation3] sm:$0xff] %vm72, 0.0
    %75 = vst.msk [vmem:[#allocation4] sm:$0xff] %vm72, 0.0
    %76 = vst.msk [vmem:[#allocation5] sm:$0xff] %vm72, 0.0
  $region41: #{single_rnn_forward.1} parent=0 // pred_fallthru
    _
  %v77 = vld [vmem:[%s57] sm:$0xff]
  %v78 = vld [vmem:[%s57 + $0x8] sm:$0xff]
  %v79 = vld [vmem:[%s57 + $0x10] sm:$0xff]
  %v80 = vld [vmem:[%s57 + $0x18] sm:$0xff]
  %v81 = vld [vmem:[%s57 + $0x20] sm:$0xff]
  %v82 = vld [vmem:[%s57 + $0x28] sm:$0xff]
  %v83 = vld [vmem:[%s57 + $0x30] sm:$0xff]
  %v84 = vld [vmem:[%s57 + $0x38] sm:$0xff]
  %v85 = vld [vmem:[%s1] sm:$0xff]
  %v86 = vld [vmem:[%s1 + $0x8] sm:$0xff]
  %v87 = vld [vmem:[%s3] sm:$0x1]
  %v89 = vperm.slane %v87, 0
  %vm91 = vcmask 130048
  %v93 = vsel %vm91, %v77, 0
  %v96 = vsel %vm91, %v78, 0
  %v99 = vsel %vm91, %v79, 0
  %v102 = vsel %vm91, %v80, 0
  %v105 = vsel %vm91, %v81, 0
  %v108 = vsel %vm91, %v82, 0
  %v111 = vsel %vm91, %v83, 0
  %v114 = vsel %vm91, %v84, 0
  %116 = vmatpush.msra.mxu0 0.0
  %117 = vmatpush.msra.mxu0 0.0
  %118 = vmatpush.msra.mxu0 0.0
  %119 = vmatpush.msra.mxu0 0.0
  %120 = vmatpush.msra.mxu0 0.0
  %121 = vmatpush.msra.mxu0 0.0
  %122 = vmatpush.msra.mxu0 0.0
  %123 = vmatpush.msra.mxu0 0.0
  %124 = vmatpush.msra.mxu0 0.0
  %125 = vmatpush.msra.mxu0 0.0
  %126 = vmatpush.msra.mxu0 0.0
  %127 = vmatpush.msra.mxu0 0.0
  %128 = vmatpush.msra.mxu0 0.0
  %129 = vmatpush.msra.mxu0 0.0
  %130 = vmatpush.msra.mxu0 %v86
  %131 = vmatpush.msra.mxu0 %v85
  %132 = vmatmul.f32.gmra.mxu0 %v93
  %v133 = vpop.f32.mrf.mxu0
  %v134 = vadd.f32 %v89, %v133
  %135 = vmatmul.f32.gmra.mxu0 %v96
  %v136 = vpop.f32.mrf.mxu0
  %v137 = vadd.f32 %v89, %v136
  %138 = vmatmul.f32.gmra.mxu0 %v99
  %v139 = vpop.f32.mrf.mxu0
  %v140 = vadd.f32 %v89, %v139
  %141 = vmatmul.f32.gmra.mxu0 %v102
  %v142 = vpop.f32.mrf.mxu0
  %v143 = vadd.f32 %v89, %v142
  %144 = vmatmul.f32.gmra.mxu0 %v105
  %v145 = vpop.f32.mrf.mxu0
  %v146 = vadd.f32 %v89, %v145
  %147 = vmatmul.f32.gmra.mxu0 %v108
  %v148 = vpop.f32.mrf.mxu0
  %v149 = vadd.f32 %v89, %v148
  %150 = vmatmul.f32.gmra.mxu0 %v111
  %v151 = vpop.f32.mrf.mxu0
  %v152 = vadd.f32 %v89, %v151
  %153 = vmatmul.f32.gmra.mxu0 %v114
  %v154 = vpop.f32.mrf.mxu0
  %v155 = vadd.f32 %v89, %v154
  %156 = vdwg.mxu0
  %157 = vst [vmem:[#allocation6] sm:$0xff] %v134
  %158 = vst [vmem:[#allocation6 + $0x8] sm:$0xff] %v137
  %159 = vst [vmem:[#allocation6 + $0x10] sm:$0xff] %v140
  %160 = vst [vmem:[#allocation6 + $0x18] sm:$0xff] %v143
  %161 = vst [vmem:[#allocation6 + $0x20] sm:$0xff] %v146
  %162 = vst [vmem:[#allocation6 + $0x28] sm:$0xff] %v149
  %163 = vst [vmem:[#allocation6 + $0x30] sm:$0xff] %v152
  %164 = vst [vmem:[#allocation6 + $0x38] sm:$0xff] %v155
  %v165 = vld [vmem:[%s2] sm:$0xff]
  %v166 = vld [vmem:[%s2 + $0x8] sm:$0xff]
  %v167 = vld [vmem:[%s2 + $0x10] sm:$0xff]
  %v168 = vld [vmem:[%s2 + $0x18] sm:$0xff]
  %v169 = vld [vmem:[#allocation2] sm:$0xff]
  %v170 = vld [vmem:[#allocation3] sm:$0xff]
  %v171 = vld [vmem:[#allocation6] sm:$0xff]
  %vm172 = vcmask 261120
  %v174 = vsel %vm172, %v169, 0
  %176 = vmatpush.msra.mxu0 0.0
  %177 = vmatpush.msra.mxu0 0.0
  %178 = vmatpush.msra.mxu0 0.0
  %179 = vmatpush.msra.mxu0 0.0
  %180 = vmatpush.msra.mxu0 0.0
  %181 = vmatpush.msra.mxu0 0.0
  %182 = vmatpush.msra.mxu0 0.0
  %183 = vmatpush.msra.mxu0 0.0
  %184 = vmatpush.msra.mxu0 0.0
  %185 = vmatpush.msra.mxu0 0.0
  %186 = vmatpush.msra.mxu0 0.0
  %187 = vmatpush.msra.mxu0 0.0
  %188 = vmatpush.msra.mxu0 %v168
  %189 = vmatpush.msra.mxu0 %v167
  %190 = vmatpush.msra.mxu0 %v166
  %191 = vmatpush.msra.mxu0 %v165
  %192 = vmatmul.f32.gmra.mxu0 %v174
  %v193 = vpop.f32.mrf.mxu0
  %v194 = vadd.f32 0.0, %v193
  %195 = vdwg.mxu0
  %v196 = vadd.f32 %v171, %v194
  %v197 = vxor.u32 %v196, 2147483648
  %v198 = vmul.f32 %v197, 1.442695
  %v199 = vpow.pop %v198
  %v200 = vadd.f32 %v199, 1.0
  %v201 = vrcp.pop %v200
  %v202 = vmul.f32 %v200, %v201
  %v203 = vsub.f32 1.0, %v202
  %v204 = vmul.f32 %v201, %v203
  %v205 = vadd.f32 %v201, %v204
  %vm206 = vweird.f32 %v200
  %vm207 = vweird.f32 %v201
  %vm208 = vmor %vm206, %vm207
  %v209 = vsel %vm208, %v201, %v205
  %v210 = vand.u32 2147483647, %v200
  %vm211 = vcmp.eq.f32.partialorder %v210, 8.507059e+37
  %v212 = vand.u32 %v200, 2147483648
  %v213 = vor.u32 1.1754944e-38, %v212
  %v214 = vsel %vm211, %v213, %v209
  %v215 = vmul.f32 1.0, %v214
  %v216 = vmul.f32 %v215, 2.0
  %v217 = vsub.f32 %v216, 1.0
  %219 = vrot.lane.b32.xlu0 %v170, 32
  %v220 = vpop.permute.xlu0 %219
  %v222 = vmul.f32 %v215, %v220
  %224 = vrot.lane.b32.xlu0 %v217, 64
  %v225 = vpop.permute.xlu0 %224
  %v227 = vmul.f32 %v215, %v225
  %229 = vrot.lane.b32.xlu0 %v227, 32
  %v230 = vpop.permute.xlu0 %229
  %v232 = vadd.f32 %v222, %v230
  %v233 = vtanh.pop %v232
  %235 = vrot.lane.b32.xlu0 %v233, 64
  %v236 = vpop.permute.xlu0 %235
  %v238 = vmul.f32 %v215, %v236
  %240 = vrot.lane.b32.xlu0 %v238, 32
  %v241 = vpop.permute.xlu0 %240
  %243 = vst.msk [vmem:[#allocation7] sm:$0xff] %vm172, %v241
  %s244 = scalar_lea.vmem [#allocation6], 8
  %v245 = vld [vmem:[%s244] sm:$0xff]
  %v246 = vsel %vm172, %v241, 0
  %248 = vmatpush.msra.mxu0 0.0
  %249 = vmatpush.msra.mxu0 0.0
  %250 = vmatpush.msra.mxu0 0.0
  %251 = vmatpush.msra.mxu0 0.0
  %252 = vmatpush.msra.mxu0 0.0
  %253 = vmatpush.msra.mxu0 0.0
  %254 = vmatpush.msra.mxu0 0.0
  %255 = vmatpush.msra.mxu0 0.0
  %256 = vmatpush.msra.mxu0 0.0
  %257 = vmatpush.msra.mxu0 0.0
  %258 = vmatpush.msra.mxu0 0.0
  %259 = vmatpush.msra.mxu0 0.0
  %260 = vmatpush.msra.mxu0 %v168
  %261 = vmatpush.msra.mxu0 %v167
  %262 = vmatpush.msra.mxu0 %v166
  %263 = vmatpush.msra.mxu0 %v165
  %264 = vmatmul.f32.gmra.mxu0 %v246
  %v265 = vpop.f32.mrf.mxu0
  %v266 = vadd.f32 0.0, %v265
  %267 = vdwg.mxu0
  %v268 = vadd.f32 %v245, %v266
  %v269 = vxor.u32 %v268, 2147483648
  %v270 = vmul.f32 %v269, 1.442695
  %v271 = vpow.pop %v270
  %v272 = vadd.f32 %v271, 1.0
  %v273 = vrcp.pop %v272
  %v274 = vmul.f32 %v272, %v273
  %v275 = vsub.f32 1.0, %v274
  %v276 = vmul.f32 %v273, %v275
  %v277 = vadd.f32 %v273, %v276
  %vm278 = vweird.f32 %v272
  %vm279 = vweird.f32 %v273
  %vm280 = vmor %vm278, %vm279
  %v281 = vsel %vm280, %v273, %v277
  %v282 = vand.u32 2147483647, %v272
  %vm283 = vcmp.eq.f32.partialorder %v282, 8.507059e+37
  %v284 = vand.u32 %v272, 2147483648
  %v285 = vor.u32 1.1754944e-38, %v284
  %v286 = vsel %vm283, %v285, %v281
  %v287 = vmul.f32 1.0, %v286
  %v288 = vmul.f32 %v287, 2.0
  %v289 = vsub.f32 %v288, 1.0
  %v290 = vmul.f32 %v287, %v232
  %292 = vrot.lane.b32.xlu0 %v289, 64
  %v293 = vpop.permute.xlu0 %292
  %v295 = vmul.f32 %v287, %v293
  %297 = vrot.lane.b32.xlu0 %v295, 32
  %v298 = vpop.permute.xlu0 %297
  %v300 = vadd.f32 %v290, %v298
  %v301 = vtanh.pop %v300
  %303 = vrot.lane.b32.xlu0 %v301, 64
  %v304 = vpop.permute.xlu0 %303
  %v306 = vmul.f32 %v287, %v304
  %308 = vrot.lane.b32.xlu0 %v306, 32
  %v309 = vpop.permute.xlu0 %308
  %s311 = scalar_lea.vmem [#allocation7], 8
  %312 = vst.msk [vmem:[%s311] sm:$0xff] %vm172, %v309
  %s313 = scalar_lea.vmem [#allocation6], 16
  %v314 = vld [vmem:[%s313] sm:$0xff]
  %v315 = vsel %vm172, %v309, 0
  %317 = vmatpush.msra.mxu0 0.0
  %318 = vmatpush.msra.mxu0 0.0
  %319 = vmatpush.msra.mxu0 0.0
  %320 = vmatpush.msra.mxu0 0.0
  %321 = vmatpush.msra.mxu0 0.0
  %322 = vmatpush.msra.mxu0 0.0
  %323 = vmatpush.msra.mxu0 0.0
  %324 = vmatpush.msra.mxu0 0.0
  %325 = vmatpush.msra.mxu0 0.0
  %326 = vmatpush.msra.mxu0 0.0
  %327 = vmatpush.msra.mxu0 0.0
  %328 = vmatpush.msra.mxu0 0.0
  %329 = vmatpush.msra.mxu0 %v168
  %330 = vmatpush.msra.mxu0 %v167
  %331 = vmatpush.msra.mxu0 %v166
  %332 = vmatpush.msra.mxu0 %v165
  %333 = vmatmul.f32.gmra.mxu0 %v315
  %v334 = vpop.f32.mrf.mxu0
  %v335 = vadd.f32 0.0, %v334
  %336 = vdwg.mxu0
  %v337 = vadd.f32 %v314, %v335
  %v338 = vxor.u32 %v337, 2147483648
  %v339 = vmul.f32 %v338, 1.442695
  %v340 = vpow.pop %v339
  %v341 = vadd.f32 %v340, 1.0
  %v342 = vrcp.pop %v341
  %v343 = vmul.f32 %v341, %v342
  %v344 = vsub.f32 1.0, %v343
  %v345 = vmul.f32 %v342, %v344
  %v346 = vadd.f32 %v342, %v345
  %vm347 = vweird.f32 %v341
  %vm348 = vweird.f32 %v342
  %vm349 = vmor %vm347, %vm348
  %v350 = vsel %vm349, %v342, %v346
  %v351 = vand.u32 2147483647, %v341
  %vm352 = vcmp.eq.f32.partialorder %v351, 8.507059e+37
  %v353 = vand.u32 %v341, 2147483648
  %v354 = vor.u32 1.1754944e-38, %v353
  %v355 = vsel %vm352, %v354, %v350
  %v356 = vmul.f32 1.0, %v355
  %v357 = vmul.f32 %v356, 2.0
  %v358 = vsub.f32 %v357, 1.0
  %v359 = vmul.f32 %v356, %v300
  %361 = vrot.lane.b32.xlu0 %v358, 64
  %v362 = vpop.permute.xlu0 %361
  %v364 = vmul.f32 %v356, %v362
  %366 = vrot.lane.b32.xlu0 %v364, 32
  %v367 = vpop.permute.xlu0 %366
  %v369 = vadd.f32 %v359, %v367
  %v370 = vtanh.pop %v369
  %372 = vrot.lane.b32.xlu0 %v370, 64
  %v373 = vpop.permute.xlu0 %372
  %v375 = vmul.f32 %v356, %v373
  %377 = vrot.lane.b32.xlu0 %v375, 32
  %v378 = vpop.permute.xlu0 %377
  %s380 = scalar_lea.vmem [#allocation7], 16
  %381 = vst.msk [vmem:[%s380] sm:$0xff] %vm172, %v378
  %s382 = scalar_lea.vmem [#allocation6], 24
  %v383 = vld [vmem:[%s382] sm:$0xff]
  %v384 = vsel %vm172, %v378, 0
  %386 = vmatpush.msra.mxu0 0.0
  %387 = vmatpush.msra.mxu0 0.0
  %388 = vmatpush.msra.mxu0 0.0
  %389 = vmatpush.msra.mxu0 0.0
  %390 = vmatpush.msra.mxu0 0.0
  %391 = vmatpush.msra.mxu0 0.0
  %392 = vmatpush.msra.mxu0 0.0
  %393 = vmatpush.msra.mxu0 0.0
  %394 = vmatpush.msra.mxu0 0.0
  %395 = vmatpush.msra.mxu0 0.0
  %396 = vmatpush.msra.mxu0 0.0
  %397 = vmatpush.msra.mxu0 0.0
  %398 = vmatpush.msra.mxu0 %v168
  %399 = vmatpush.msra.mxu0 %v167
  %400 = vmatpush.msra.mxu0 %v166
  %401 = vmatpush.msra.mxu0 %v165
  %402 = vmatmul.f32.gmra.mxu0 %v384
  %v403 = vpop.f32.mrf.mxu0
  %v404 = vadd.f32 0.0, %v403
  %405 = vdwg.mxu0
  %v406 = vadd.f32 %v383, %v404
  %v407 = vxor.u32 %v406, 2147483648
  %v408 = vmul.f32 %v407, 1.442695
  %v409 = vpow.pop %v408
  %v410 = vadd.f32 %v409, 1.0
  %v411 = vrcp.pop %v410
  %v412 = vmul.f32 %v410, %v411
  %v413 = vsub.f32 1.0, %v412
  %v414 = vmul.f32 %v411, %v413
  %v415 = vadd.f32 %v411, %v414
  %vm416 = vweird.f32 %v410
  %vm417 = vweird.f32 %v411
  %vm418 = vmor %vm416, %vm417
  %v419 = vsel %vm418, %v411, %v415
  %v420 = vand.u32 2147483647, %v410
  %vm421 = vcmp.eq.f32.partialorder %v420, 8.507059e+37
  %v422 = vand.u32 %v410, 2147483648
  %v423 = vor.u32 1.1754944e-38, %v422
  %v424 = vsel %vm421, %v423, %v419
  %v425 = vmul.f32 1.0, %v424
  %v426 = vmul.f32 %v425, 2.0
  %v427 = vsub.f32 %v426, 1.0
  %v428 = vmul.f32 %v425, %v369
  %430 = vrot.lane.b32.xlu0 %v427, 64
  %v431 = vpop.permute.xlu0 %430
  %v433 = vmul.f32 %v425, %v431
  %435 = vrot.lane.b32.xlu0 %v433, 32
  %v436 = vpop.permute.xlu0 %435
  %v438 = vadd.f32 %v428, %v436
  %v439 = vtanh.pop %v438
  %441 = vrot.lane.b32.xlu0 %v439, 64
  %v442 = vpop.permute.xlu0 %441
  %v444 = vmul.f32 %v425, %v442
  %446 = vrot.lane.b32.xlu0 %v444, 32
  %v447 = vpop.permute.xlu0 %446
  %s449 = scalar_lea.vmem [#allocation7], 24
  %450 = vst.msk [vmem:[%s449] sm:$0xff] %vm172, %v447
  %s451 = scalar_lea.vmem [#allocation6], 32
  %v452 = vld [vmem:[%s451] sm:$0xff]
  %v453 = vsel %vm172, %v447, 0
  %455 = vmatpush.msra.mxu0 0.0
  %456 = vmatpush.msra.mxu0 0.0
  %457 = vmatpush.msra.mxu0 0.0
  %458 = vmatpush.msra.mxu0 0.0
  %459 = vmatpush.msra.mxu0 0.0
  %460 = vmatpush.msra.mxu0 0.0
  %461 = vmatpush.msra.mxu0 0.0
  %462 = vmatpush.msra.mxu0 0.0
  %463 = vmatpush.msra.mxu0 0.0
  %464 = vmatpush.msra.mxu0 0.0
  %465 = vmatpush.msra.mxu0 0.0
  %466 = vmatpush.msra.mxu0 0.0
  %467 = vmatpush.msra.mxu0 %v168
  %468 = vmatpush.msra.mxu0 %v167
  %469 = vmatpush.msra.mxu0 %v166
  %470 = vmatpush.msra.mxu0 %v165
  %471 = vmatmul.f32.gmra.mxu0 %v453
  %v472 = vpop.f32.mrf.mxu0
  %v473 = vadd.f32 0.0, %v472
  %474 = vdwg.mxu0
  %v475 = vadd.f32 %v452, %v473
  %v476 = vxor.u32 %v475, 2147483648
  %v477 = vmul.f32 %v476, 1.442695
  %v478 = vpow.pop %v477
  %v479 = vadd.f32 %v478, 1.0
  %v480 = vrcp.pop %v479
  %v481 = vmul.f32 %v479, %v480
  %v482 = vsub.f32 1.0, %v481
  %v483 = vmul.f32 %v480, %v482
  %v484 = vadd.f32 %v480, %v483
  %vm485 = vweird.f32 %v479
  %vm486 = vweird.f32 %v480
  %vm487 = vmor %vm485, %vm486
  %v488 = vsel %vm487, %v480, %v484
  %v489 = vand.u32 2147483647, %v479
  %vm490 = vcmp.eq.f32.partialorder %v489, 8.507059e+37
  %v491 = vand.u32 %v479, 2147483648
  %v492 = vor.u32 1.1754944e-38, %v491
  %v493 = vsel %vm490, %v492, %v488
  %v494 = vmul.f32 1.0, %v493
  %v495 = vmul.f32 %v494, 2.0
  %v496 = vsub.f32 %v495, 1.0
  %v497 = vmul.f32 %v494, %v438
  %499 = vrot.lane.b32.xlu0 %v496, 64
  %v500 = vpop.permute.xlu0 %499
  %v502 = vmul.f32 %v494, %v500
  %504 = vrot.lane.b32.xlu0 %v502, 32
  %v505 = vpop.permute.xlu0 %504
  %v507 = vadd.f32 %v497, %v505
  %v508 = vtanh.pop %v507
  %510 = vrot.lane.b32.xlu0 %v508, 64
  %v511 = vpop.permute.xlu0 %510
  %v513 = vmul.f32 %v494, %v511
  %515 = vrot.lane.b32.xlu0 %v513, 32
  %v516 = vpop.permute.xlu0 %515
  %s518 = scalar_lea.vmem [#allocation7], 32
  %519 = vst.msk [vmem:[%s518] sm:$0xff] %vm172, %v516
  %s520 = scalar_lea.vmem [#allocation6], 40
  %v521 = vld [vmem:[%s520] sm:$0xff]
  %v522 = vsel %vm172, %v516, 0
  %524 = vmatpush.msra.mxu0 0.0
  %525 = vmatpush.msra.mxu0 0.0
  %526 = vmatpush.msra.mxu0 0.0
  %527 = vmatpush.msra.mxu0 0.0
  %528 = vmatpush.msra.mxu0 0.0
  %529 = vmatpush.msra.mxu0 0.0
  %530 = vmatpush.msra.mxu0 0.0
  %531 = vmatpush.msra.mxu0 0.0
  %532 = vmatpush.msra.mxu0 0.0
  %533 = vmatpush.msra.mxu0 0.0
  %534 = vmatpush.msra.mxu0 0.0
  %535 = vmatpush.msra.mxu0 0.0
  %536 = vmatpush.msra.mxu0 %v168
  %537 = vmatpush.msra.mxu0 %v167
  %538 = vmatpush.msra.mxu0 %v166
  %539 = vmatpush.msra.mxu0 %v165
  %540 = vmatmul.f32.gmra.mxu0 %v522
  %v541 = vpop.f32.mrf.mxu0
  %v542 = vadd.f32 0.0, %v541
  %543 = vdwg.mxu0
  %v544 = vadd.f32 %v521, %v542
  %v545 = vxor.u32 %v544, 2147483648
  %v546 = vmul.f32 %v545, 1.442695
  %v547 = vpow.pop %v546
  %v548 = vadd.f32 %v547, 1.0
  %v549 = vrcp.pop %v548
  %v550 = vmul.f32 %v548, %v549
  %v551 = vsub.f32 1.0, %v550
  %v552 = vmul.f32 %v549, %v551
  %v553 = vadd.f32 %v549, %v552
  %vm554 = vweird.f32 %v548
  %vm555 = vweird.f32 %v549
  %vm556 = vmor %vm554, %vm555
  %v557 = vsel %vm556, %v549, %v553
  %v558 = vand.u32 2147483647, %v548
  %vm559 = vcmp.eq.f32.partialorder %v558, 8.507059e+37
  %v560 = vand.u32 %v548, 2147483648
  %v561 = vor.u32 1.1754944e-38, %v560
  %v562 = vsel %vm559, %v561, %v557
  %v563 = vmul.f32 1.0, %v562
  %v564 = vmul.f32 %v563, 2.0
  %v565 = vsub.f32 %v564, 1.0
  %v566 = vmul.f32 %v563, %v507
  %568 = vrot.lane.b32.xlu0 %v565, 64
  %v569 = vpop.permute.xlu0 %568
  %v571 = vmul.f32 %v563, %v569
  %573 = vrot.lane.b32.xlu0 %v571, 32
  %v574 = vpop.permute.xlu0 %573
  %v576 = vadd.f32 %v566, %v574
  %v577 = vtanh.pop %v576
  %579 = vrot.lane.b32.xlu0 %v577, 64
  %v580 = vpop.permute.xlu0 %579
  %v582 = vmul.f32 %v563, %v580
  %584 = vrot.lane.b32.xlu0 %v582, 32
  %v585 = vpop.permute.xlu0 %584
  %s587 = scalar_lea.vmem [#allocation7], 40
  %588 = vst.msk [vmem:[%s587] sm:$0xff] %vm172, %v585
  %s589 = scalar_lea.vmem [#allocation6], 48
  %v590 = vld [vmem:[%s589] sm:$0xff]
  %v591 = vsel %vm172, %v585, 0
  %593 = vmatpush.msra.mxu0 0.0
  %594 = vmatpush.msra.mxu0 0.0
  %595 = vmatpush.msra.mxu0 0.0
  %596 = vmatpush.msra.mxu0 0.0
  %597 = vmatpush.msra.mxu0 0.0
  %598 = vmatpush.msra.mxu0 0.0
  %599 = vmatpush.msra.mxu0 0.0
  %600 = vmatpush.msra.mxu0 0.0
  %601 = vmatpush.msra.mxu0 0.0
  %602 = vmatpush.msra.mxu0 0.0
  %603 = vmatpush.msra.mxu0 0.0
  %604 = vmatpush.msra.mxu0 0.0
  %605 = vmatpush.msra.mxu0 %v168
  %606 = vmatpush.msra.mxu0 %v167
  %607 = vmatpush.msra.mxu0 %v166
  %608 = vmatpush.msra.mxu0 %v165
  %609 = vmatmul.f32.gmra.mxu0 %v591
  %v610 = vpop.f32.mrf.mxu0
  %v611 = vadd.f32 0.0, %v610
  %612 = vdwg.mxu0
  %v613 = vadd.f32 %v590, %v611
  %v614 = vxor.u32 %v613, 2147483648
  %v615 = vmul.f32 %v614, 1.442695
  %v616 = vpow.pop %v615
  %v617 = vadd.f32 %v616, 1.0
  %v618 = vrcp.pop %v617
  %v619 = vmul.f32 %v617, %v618
  %v620 = vsub.f32 1.0, %v619
  %v621 = vmul.f32 %v618, %v620
  %v622 = vadd.f32 %v618, %v621
  %vm623 = vweird.f32 %v617
  %vm624 = vweird.f32 %v618
  %vm625 = vmor %vm623, %vm624
  %v626 = vsel %vm625, %v618, %v622
  %v627 = vand.u32 2147483647, %v617
  %vm628 = vcmp.eq.f32.partialorder %v627, 8.507059e+37
  %v629 = vand.u32 %v617, 2147483648
  %v630 = vor.u32 1.1754944e-38, %v629
  %v631 = vsel %vm628, %v630, %v626
  %v632 = vmul.f32 1.0, %v631
  %v633 = vmul.f32 %v632, 2.0
  %v634 = vsub.f32 %v633, 1.0
  %v635 = vmul.f32 %v632, %v576
  %637 = vrot.lane.b32.xlu0 %v634, 64
  %v638 = vpop.permute.xlu0 %637
  %v640 = vmul.f32 %v632, %v638
  %642 = vrot.lane.b32.xlu0 %v640, 32
  %v643 = vpop.permute.xlu0 %642
  %v645 = vadd.f32 %v635, %v643
  %v646 = vtanh.pop %v645
  %648 = vrot.lane.b32.xlu0 %v646, 64
  %v649 = vpop.permute.xlu0 %648
  %v651 = vmul.f32 %v632, %v649
  %653 = vrot.lane.b32.xlu0 %v651, 32
  %v654 = vpop.permute.xlu0 %653
  %s656 = scalar_lea.vmem [#allocation7], 48
  %657 = vst.msk [vmem:[%s656] sm:$0xff] %vm172, %v654
  %s658 = scalar_lea.vmem [#allocation6], 56
  %v659 = vld [vmem:[%s658] sm:$0xff]
  %v660 = vsel %vm172, %v654, 0
  %662 = vmatpush.msra.mxu0 0.0
  %663 = vmatpush.msra.mxu0 0.0
  %664 = vmatpush.msra.mxu0 0.0
  %665 = vmatpush.msra.mxu0 0.0
  %666 = vmatpush.msra.mxu0 0.0
  %667 = vmatpush.msra.mxu0 0.0
  %668 = vmatpush.msra.mxu0 0.0
  %669 = vmatpush.msra.mxu0 0.0
  %670 = vmatpush.msra.mxu0 0.0
  %671 = vmatpush.msra.mxu0 0.0
  %672 = vmatpush.msra.mxu0 0.0
  %673 = vmatpush.msra.mxu0 0.0
  %674 = vmatpush.msra.mxu0 %v168
  %675 = vmatpush.msra.mxu0 %v167
  %676 = vmatpush.msra.mxu0 %v166
  %677 = vmatpush.msra.mxu0 %v165
  %678 = vmatmul.f32.gmra.mxu0 %v660
  %v679 = vpop.f32.mrf.mxu0
  %v680 = vadd.f32 0.0, %v679
  %681 = vdwg.mxu0
  %v682 = vadd.f32 %v659, %v680
  %v683 = vxor.u32 %v682, 2147483648
  %v684 = vmul.f32 %v683, 1.442695
  %v685 = vpow.pop %v684
  %v686 = vadd.f32 %v685, 1.0
  %v687 = vrcp.pop %v686
  %v688 = vmul.f32 %v686, %v687
  %v689 = vsub.f32 1.0, %v688
  %v690 = vmul.f32 %v687, %v689
  %v691 = vadd.f32 %v687, %v690
  %vm692 = vweird.f32 %v686
  %vm693 = vweird.f32 %v687
  %vm694 = vmor %vm692, %vm693
  %v695 = vsel %vm694, %v687, %v691
  %v696 = vand.u32 2147483647, %v686
  %vm697 = vcmp.eq.f32.partialorder %v696, 8.507059e+37
  %v698 = vand.u32 %v686, 2147483648
  %v699 = vor.u32 1.1754944e-38, %v698
  %v700 = vsel %vm697, %v699, %v695
  %v701 = vmul.f32 1.0, %v700
  %v702 = vmul.f32 %v701, 2.0
  %v703 = vsub.f32 %v702, 1.0
  %v704 = vmul.f32 %v701, %v645
  %706 = vrot.lane.b32.xlu0 %v703, 64
  %v707 = vpop.permute.xlu0 %706
  %v709 = vmul.f32 %v701, %v707
  %711 = vrot.lane.b32.xlu0 %v709, 32
  %v712 = vpop.permute.xlu0 %711
  %v714 = vadd.f32 %v704, %v712
  %v715 = vtanh.pop %v714
  %717 = vrot.lane.b32.xlu0 %v715, 64
  %v718 = vpop.permute.xlu0 %717
  %v720 = vmul.f32 %v701, %v718
  %722 = vrot.lane.b32.xlu0 %v720, 32
  %v723 = vpop.permute.xlu0 %722
  %s725 = scalar_lea.vmem [#allocation7], 56
  %726 = vst.msk [vmem:[%s725] sm:$0xff] %vm172, %v723
  %727 = vst.msk [vmem:[#allocation2] sm:$0xff] %vm172, %v723
  %729 = vrot.lane.b32.xlu0 %v714, 96
  %v730 = vpop.permute.xlu0 %729
  %732 = vst.msk [vmem:[#allocation3] sm:$0xff] %vm172, %v730
  %v733 = vld [vmem:[#allocation7] sm:$0xff]
  %v734 = vld [vmem:[#allocation7 + $0x8] sm:$0xff]
  %v735 = vld [vmem:[#allocation7 + $0x10] sm:$0xff]
  %v736 = vld [vmem:[#allocation7 + $0x18] sm:$0xff]
  %v737 = vld [vmem:[#allocation7 + $0x20] sm:$0xff]
  %v738 = vld [vmem:[#allocation7 + $0x28] sm:$0xff]
  %v739 = vld [vmem:[#allocation7 + $0x30] sm:$0xff]
  %v740 = vld [vmem:[#allocation7 + $0x38] sm:$0xff]
  %v741 = vld [vmem:[%s4] sm:$0xff]
  %v742 = vld [vmem:[%s4 + $0x8] sm:$0xff]
  %v743 = vld [vmem:[%s4 + $0x10] sm:$0xff]
  %v744 = vld [vmem:[%s4 + $0x18] sm:$0xff]
  %v745 = vld [vmem:[%s6] sm:$0x1]
  %v747 = vperm.slane %v745, 0
  %v750 = vsel %vm172, %v733, 0
  %v753 = vsel %vm172, %v734, 0
  %v756 = vsel %vm172, %v735, 0
  %v759 = vsel %vm172, %v736, 0
  %v762 = vsel %vm172, %v737, 0
  %v765 = vsel %vm172, %v738, 0
  %v768 = vsel %vm172, %v739, 0
  %v771 = vsel %vm172, %v740, 0
  %773 = vmatpush.msra.mxu0 0.0
  %774 = vmatpush.msra.mxu0 0.0
  %775 = vmatpush.msra.mxu0 0.0
  %776 = vmatpush.msra.mxu0 0.0
  %777 = vmatpush.msra.mxu0 0.0
  %778 = vmatpush.msra.mxu0 0.0
  %779 = vmatpush.msra.mxu0 0.0
  %780 = vmatpush.msra.mxu0 0.0
  %781 = vmatpush.msra.mxu0 0.0
  %782 = vmatpush.msra.mxu0 0.0
  %783 = vmatpush.msra.mxu0 0.0
  %784 = vmatpush.msra.mxu0 0.0
  %785 = vmatpush.msra.mxu0 %v744
  %786 = vmatpush.msra.mxu0 %v743
  %787 = vmatpush.msra.mxu0 %v742
  %788 = vmatpush.msra.mxu0 %v741
  %789 = vmatmul.f32.gmra.mxu0 %v750
  %v790 = vpop.f32.mrf.mxu0
  %v791 = vadd.f32 %v747, %v790
  %792 = vmatmul.f32.gmra.mxu0 %v753
  %v793 = vpop.f32.mrf.mxu0
  %v794 = vadd.f32 %v747, %v793
  %795 = vmatmul.f32.gmra.mxu0 %v756
  %v796 = vpop.f32.mrf.mxu0
  %v797 = vadd.f32 %v747, %v796
  %798 = vmatmul.f32.gmra.mxu0 %v759
  %v799 = vpop.f32.mrf.mxu0
  %v800 = vadd.f32 %v747, %v799
  %801 = vmatmul.f32.gmra.mxu0 %v762
  %v802 = vpop.f32.mrf.mxu0
  %v803 = vadd.f32 %v747, %v802
  %804 = vmatmul.f32.gmra.mxu0 %v765
  %v805 = vpop.f32.mrf.mxu0
  %v806 = vadd.f32 %v747, %v805
  %807 = vmatmul.f32.gmra.mxu0 %v768
  %v808 = vpop.f32.mrf.mxu0
  %v809 = vadd.f32 %v747, %v808
  %810 = vmatmul.f32.gmra.mxu0 %v771
  %v811 = vpop.f32.mrf.mxu0
  %v812 = vadd.f32 %v747, %v811
  %813 = vdwg.mxu0
  %814 = vst [vmem:[#allocation6] sm:$0xff] %v791
  %815 = vst [vmem:[#allocation6 + $0x8] sm:$0xff] %v794
  %816 = vst [vmem:[#allocation6 + $0x10] sm:$0xff] %v797
  %817 = vst [vmem:[#allocation6 + $0x18] sm:$0xff] %v800
  %818 = vst [vmem:[#allocation6 + $0x20] sm:$0xff] %v803
  %819 = vst [vmem:[#allocation6 + $0x28] sm:$0xff] %v806
  %820 = vst [vmem:[#allocation6 + $0x30] sm:$0xff] %v809
  %821 = vst [vmem:[#allocation6 + $0x38] sm:$0xff] %v812
  %v822 = vld [vmem:[%s5] sm:$0xff]
  %v823 = vld [vmem:[%s5 + $0x8] sm:$0xff]
  %v824 = vld [vmem:[%s5 + $0x10] sm:$0xff]
  %v825 = vld [vmem:[%s5 + $0x18] sm:$0xff]
  %v826 = vld [vmem:[#allocation4] sm:$0xff]
  %v827 = vld [vmem:[#allocation5] sm:$0xff]
  %v828 = vld [vmem:[#allocation6] sm:$0xff]
  %v830 = vsel %vm172, %v826, 0
  %832 = vmatpush.msra.mxu0 0.0
  %833 = vmatpush.msra.mxu0 0.0
  %834 = vmatpush.msra.mxu0 0.0
  %835 = vmatpush.msra.mxu0 0.0
  %836 = vmatpush.msra.mxu0 0.0
  %837 = vmatpush.msra.mxu0 0.0
  %838 = vmatpush.msra.mxu0 0.0
  %839 = vmatpush.msra.mxu0 0.0
  %840 = vmatpush.msra.mxu0 0.0
  %841 = vmatpush.msra.mxu0 0.0
  %842 = vmatpush.msra.mxu0 0.0
  %843 = vmatpush.msra.mxu0 0.0
  %844 = vmatpush.msra.mxu0 %v825
  %845 = vmatpush.msra.mxu0 %v824
  %846 = vmatpush.msra.mxu0 %v823
  %847 = vmatpush.msra.mxu0 %v822
  %848 = vmatmul.f32.gmra.mxu0 %v830
  %v849 = vpop.f32.mrf.mxu0
  %v850 = vadd.f32 0.0, %v849
  %851 = vdwg.mxu0
  %v852 = vadd.f32 %v828, %v850
  %v853 = vxor.u32 %v852, 2147483648
  %v854 = vmul.f32 %v853, 1.442695
  %v855 = vpow.pop %v854
  %v856 = vadd.f32 %v855, 1.0
  %v857 = vrcp.pop %v856
  %v858 = vmul.f32 %v856, %v857
  %v859 = vsub.f32 1.0, %v858
  %v860 = vmul.f32 %v857, %v859
  %v861 = vadd.f32 %v857, %v860
  %vm862 = vweird.f32 %v856
  %vm863 = vweird.f32 %v857
  %vm864 = vmor %vm862, %vm863
  %v865 = vsel %vm864, %v857, %v861
  %v866 = vand.u32 2147483647, %v856
  %vm867 = vcmp.eq.f32.partialorder %v866, 8.507059e+37
  %v868 = vand.u32 %v856, 2147483648
  %v869 = vor.u32 1.1754944e-38, %v868
  %v870 = vsel %vm867, %v869, %v865
  %v871 = vmul.f32 1.0, %v870
  %v872 = vmul.f32 %v871, 2.0
  %v873 = vsub.f32 %v872, 1.0
  %875 = vrot.lane.b32.xlu0 %v827, 32
  %v876 = vpop.permute.xlu0 %875
  %v878 = vmul.f32 %v871, %v876
  %880 = vrot.lane.b32.xlu0 %v873, 64
  %v881 = vpop.permute.xlu0 %880
  %v883 = vmul.f32 %v871, %v881
  %885 = vrot.lane.b32.xlu0 %v883, 32
  %v886 = vpop.permute.xlu0 %885
  %v888 = vadd.f32 %v878, %v886
  %v889 = vtanh.pop %v888
  %891 = vrot.lane.b32.xlu0 %v889, 64
  %v892 = vpop.permute.xlu0 %891
  %v894 = vmul.f32 %v871, %v892
  %896 = vrot.lane.b32.xlu0 %v894, 32
  %v897 = vpop.permute.xlu0 %896
  %899 = vst.msk [vmem:[#allocation7] sm:$0xff] %vm172, %v897
  %v900 = vld [vmem:[%s244] sm:$0xff]
  %v901 = vsel %vm172, %v897, 0
  %903 = vmatpush.msra.mxu0 0.0
  %904 = vmatpush.msra.mxu0 0.0
  %905 = vmatpush.msra.mxu0 0.0
  %906 = vmatpush.msra.mxu0 0.0
  %907 = vmatpush.msra.mxu0 0.0
  %908 = vmatpush.msra.mxu0 0.0
  %909 = vmatpush.msra.mxu0 0.0
  %910 = vmatpush.msra.mxu0 0.0
  %911 = vmatpush.msra.mxu0 0.0
  %912 = vmatpush.msra.mxu0 0.0
  %913 = vmatpush.msra.mxu0 0.0
  %914 = vmatpush.msra.mxu0 0.0
  %915 = vmatpush.msra.mxu0 %v825
  %916 = vmatpush.msra.mxu0 %v824
  %917 = vmatpush.msra.mxu0 %v823
  %918 = vmatpush.msra.mxu0 %v822
  %919 = vmatmul.f32.gmra.mxu0 %v901
  %v920 = vpop.f32.mrf.mxu0
  %v921 = vadd.f32 0.0, %v920
  %922 = vdwg.mxu0
  %v923 = vadd.f32 %v900, %v921
  %v924 = vxor.u32 %v923, 2147483648
  %v925 = vmul.f32 %v924, 1.442695
  %v926 = vpow.pop %v925
  %v927 = vadd.f32 %v926, 1.0
  %v928 = vrcp.pop %v927
  %v929 = vmul.f32 %v927, %v928
  %v930 = vsub.f32 1.0, %v929
  %v931 = vmul.f32 %v928, %v930
  %v932 = vadd.f32 %v928, %v931
  %vm933 = vweird.f32 %v927
  %vm934 = vweird.f32 %v928
  %vm935 = vmor %vm933, %vm934
  %v936 = vsel %vm935, %v928, %v932
  %v937 = vand.u32 2147483647, %v927
  %vm938 = vcmp.eq.f32.partialorder %v937, 8.507059e+37
  %v939 = vand.u32 %v927, 2147483648
  %v940 = vor.u32 1.1754944e-38, %v939
  %v941 = vsel %vm938, %v940, %v936
  %v942 = vmul.f32 1.0, %v941
  %v943 = vmul.f32 %v942, 2.0
  %v944 = vsub.f32 %v943, 1.0
  %v945 = vmul.f32 %v942, %v888
  %947 = vrot.lane.b32.xlu0 %v944, 64
  %v948 = vpop.permute.xlu0 %947
  %v950 = vmul.f32 %v942, %v948
  %952 = vrot.lane.b32.xlu0 %v950, 32
  %v953 = vpop.permute.xlu0 %952
  %v955 = vadd.f32 %v945, %v953
  %v956 = vtanh.pop %v955
  %958 = vrot.lane.b32.xlu0 %v956, 64
  %v959 = vpop.permute.xlu0 %958
  %v961 = vmul.f32 %v942, %v959
  %963 = vrot.lane.b32.xlu0 %v961, 32
  %v964 = vpop.permute.xlu0 %963
  %966 = vst.msk [vmem:[%s311] sm:$0xff] %vm172, %v964
  %v967 = vld [vmem:[%s313] sm:$0xff]
  %v968 = vsel %vm172, %v964, 0
  %970 = vmatpush.msra.mxu0 0.0
  %971 = vmatpush.msra.mxu0 0.0
  %972 = vmatpush.msra.mxu0 0.0
  %973 = vmatpush.msra.mxu0 0.0
  %974 = vmatpush.msra.mxu0 0.0
  %975 = vmatpush.msra.mxu0 0.0
  %976 = vmatpush.msra.mxu0 0.0
  %977 = vmatpush.msra.mxu0 0.0
  %978 = vmatpush.msra.mxu0 0.0
  %979 = vmatpush.msra.mxu0 0.0
  %980 = vmatpush.msra.mxu0 0.0
  %981 = vmatpush.msra.mxu0 0.0
  %982 = vmatpush.msra.mxu0 %v825
  %983 = vmatpush.msra.mxu0 %v824
  %984 = vmatpush.msra.mxu0 %v823
  %985 = vmatpush.msra.mxu0 %v822
  %986 = vmatmul.f32.gmra.mxu0 %v968
  %v987 = vpop.f32.mrf.mxu0
  %v988 = vadd.f32 0.0, %v987
  %989 = vdwg.mxu0
  %v990 = vadd.f32 %v967, %v988
  %v991 = vxor.u32 %v990, 2147483648
  %v992 = vmul.f32 %v991, 1.442695
  %v993 = vpow.pop %v992
  %v994 = vadd.f32 %v993, 1.0
  %v995 = vrcp.pop %v994
  %v996 = vmul.f32 %v994, %v995
  %v997 = vsub.f32 1.0, %v996
  %v998 = vmul.f32 %v995, %v997
  %v999 = vadd.f32 %v995, %v998
  %vm1000 = vweird.f32 %v994
  %vm1001 = vweird.f32 %v995
  %vm1002 = vmor %vm1000, %vm1001
  %v1003 = vsel %vm1002, %v995, %v999
  %v1004 = vand.u32 2147483647, %v994
  %vm1005 = vcmp.eq.f32.partialorder %v1004, 8.507059e+37
  %v1006 = vand.u32 %v994, 2147483648
  %v1007 = vor.u32 1.1754944e-38, %v1006
  %v1008 = vsel %vm1005, %v1007, %v1003
  %v1009 = vmul.f32 1.0, %v1008
  %v1010 = vmul.f32 %v1009, 2.0
  %v1011 = vsub.f32 %v1010, 1.0
  %v1012 = vmul.f32 %v1009, %v955
  %1014 = vrot.lane.b32.xlu0 %v1011, 64
  %v1015 = vpop.permute.xlu0 %1014
  %v1017 = vmul.f32 %v1009, %v1015
  %1019 = vrot.lane.b32.xlu0 %v1017, 32
  %v1020 = vpop.permute.xlu0 %1019
  %v1022 = vadd.f32 %v1012, %v1020
  %v1023 = vtanh.pop %v1022
  %1025 = vrot.lane.b32.xlu0 %v1023, 64
  %v1026 = vpop.permute.xlu0 %1025
  %v1028 = vmul.f32 %v1009, %v1026
  %1030 = vrot.lane.b32.xlu0 %v1028, 32
  %v1031 = vpop.permute.xlu0 %1030
  %1033 = vst.msk [vmem:[%s380] sm:$0xff] %vm172, %v1031
  %v1034 = vld [vmem:[%s382] sm:$0xff]
  %v1035 = vsel %vm172, %v1031, 0
  %1037 = vmatpush.msra.mxu0 0.0
  %1038 = vmatpush.msra.mxu0 0.0
  %1039 = vmatpush.msra.mxu0 0.0
  %1040 = vmatpush.msra.mxu0 0.0
  %1041 = vmatpush.msra.mxu0 0.0
  %1042 = vmatpush.msra.mxu0 0.0
  %1043 = vmatpush.msra.mxu0 0.0
  %1044 = vmatpush.msra.mxu0 0.0
  %1045 = vmatpush.msra.mxu0 0.0
  %1046 = vmatpush.msra.mxu0 0.0
  %1047 = vmatpush.msra.mxu0 0.0
  %1048 = vmatpush.msra.mxu0 0.0
  %1049 = vmatpush.msra.mxu0 %v825
  %1050 = vmatpush.msra.mxu0 %v824
  %1051 = vmatpush.msra.mxu0 %v823
  %1052 = vmatpush.msra.mxu0 %v822
  %1053 = vmatmul.f32.gmra.mxu0 %v1035
  %v1054 = vpop.f32.mrf.mxu0
  %v1055 = vadd.f32 0.0, %v1054
  %1056 = vdwg.mxu0
  %v1057 = vadd.f32 %v1034, %v1055
  %v1058 = vxor.u32 %v1057, 2147483648
  %v1059 = vmul.f32 %v1058, 1.442695
  %v1060 = vpow.pop %v1059
  %v1061 = vadd.f32 %v1060, 1.0
  %v1062 = vrcp.pop %v1061
  %v1063 = vmul.f32 %v1061, %v1062
  %v1064 = vsub.f32 1.0, %v1063
  %v1065 = vmul.f32 %v1062, %v1064
  %v1066 = vadd.f32 %v1062, %v1065
  %vm1067 = vweird.f32 %v1061
  %vm1068 = vweird.f32 %v1062
  %vm1069 = vmor %vm1067, %vm1068
  %v1070 = vsel %vm1069, %v1062, %v1066
  %v1071 = vand.u32 2147483647, %v1061
  %vm1072 = vcmp.eq.f32.partialorder %v1071, 8.507059e+37
  %v1073 = vand.u32 %v1061, 2147483648
  %v1074 = vor.u32 1.1754944e-38, %v1073
  %v1075 = vsel %vm1072, %v1074, %v1070
  %v1076 = vmul.f32 1.0, %v1075
  %v1077 = vmul.f32 %v1076, 2.0
  %v1078 = vsub.f32 %v1077, 1.0
  %v1079 = vmul.f32 %v1076, %v1022
  %1081 = vrot.lane.b32.xlu0 %v1078, 64
  %v1082 = vpop.permute.xlu0 %1081
  %v1084 = vmul.f32 %v1076, %v1082
  %1086 = vrot.lane.b32.xlu0 %v1084, 32
  %v1087 = vpop.permute.xlu0 %1086
  %v1089 = vadd.f32 %v1079, %v1087
  %v1090 = vtanh.pop %v1089
  %1092 = vrot.lane.b32.xlu0 %v1090, 64
  %v1093 = vpop.permute.xlu0 %1092
  %v1095 = vmul.f32 %v1076, %v1093
  %1097 = vrot.lane.b32.xlu0 %v1095, 32
  %v1098 = vpop.permute.xlu0 %1097
  %1100 = vst.msk [vmem:[%s449] sm:$0xff] %vm172, %v1098
  %v1101 = vld [vmem:[%s451] sm:$0xff]
  %v1102 = vsel %vm172, %v1098, 0
  %1104 = vmatpush.msra.mxu0 0.0
  %1105 = vmatpush.msra.mxu0 0.0
  %1106 = vmatpush.msra.mxu0 0.0
  %1107 = vmatpush.msra.mxu0 0.0
  %1108 = vmatpush.msra.mxu0 0.0
  %1109 = vmatpush.msra.mxu0 0.0
  %1110 = vmatpush.msra.mxu0 0.0
  %1111 = vmatpush.msra.mxu0 0.0
  %1112 = vmatpush.msra.mxu0 0.0
  %1113 = vmatpush.msra.mxu0 0.0
  %1114 = vmatpush.msra.mxu0 0.0
  %1115 = vmatpush.msra.mxu0 0.0
  %1116 = vmatpush.msra.mxu0 %v825
  %1117 = vmatpush.msra.mxu0 %v824
  %1118 = vmatpush.msra.mxu0 %v823
  %1119 = vmatpush.msra.mxu0 %v822
  %1120 = vmatmul.f32.gmra.mxu0 %v1102
  %v1121 = vpop.f32.mrf.mxu0
  %v1122 = vadd.f32 0.0, %v1121
  %1123 = vdwg.mxu0
  %v1124 = vadd.f32 %v1101, %v1122
  %v1125 = vxor.u32 %v1124, 2147483648
  %v1126 = vmul.f32 %v1125, 1.442695
  %v1127 = vpow.pop %v1126
  %v1128 = vadd.f32 %v1127, 1.0
  %v1129 = vrcp.pop %v1128
  %v1130 = vmul.f32 %v1128, %v1129
  %v1131 = vsub.f32 1.0, %v1130
  %v1132 = vmul.f32 %v1129, %v1131
  %v1133 = vadd.f32 %v1129, %v1132
  %vm1134 = vweird.f32 %v1128
  %vm1135 = vweird.f32 %v1129
  %vm1136 = vmor %vm1134, %vm1135
  %v1137 = vsel %vm1136, %v1129, %v1133
  %v1138 = vand.u32 2147483647, %v1128
  %vm1139 = vcmp.eq.f32.partialorder %v1138, 8.507059e+37
  %v1140 = vand.u32 %v1128, 2147483648
  %v1141 = vor.u32 1.1754944e-38, %v1140
  %v1142 = vsel %vm1139, %v1141, %v1137
  %v1143 = vmul.f32 1.0, %v1142
  %v1144 = vmul.f32 %v1143, 2.0
  %v1145 = vsub.f32 %v1144, 1.0
  %v1146 = vmul.f32 %v1143, %v1089
  %1148 = vrot.lane.b32.xlu0 %v1145, 64
  %v1149 = vpop.permute.xlu0 %1148
  %v1151 = vmul.f32 %v1143, %v1149
  %1153 = vrot.lane.b32.xlu0 %v1151, 32
  %v1154 = vpop.permute.xlu0 %1153
  %v1156 = vadd.f32 %v1146, %v1154
  %v1157 = vtanh.pop %v1156
  %1159 = vrot.lane.b32.xlu0 %v1157, 64
  %v1160 = vpop.permute.xlu0 %1159
  %v1162 = vmul.f32 %v1143, %v1160
  %1164 = vrot.lane.b32.xlu0 %v1162, 32
  %v1165 = vpop.permute.xlu0 %1164
  %1167 = vst.msk [vmem:[%s518] sm:$0xff] %vm172, %v1165
  %v1168 = vld [vmem:[%s520] sm:$0xff]
  %v1169 = vsel %vm172, %v1165, 0
  %1171 = vmatpush.msra.mxu0 0.0
  %1172 = vmatpush.msra.mxu0 0.0
  %1173 = vmatpush.msra.mxu0 0.0
  %1174 = vmatpush.msra.mxu0 0.0
  %1175 = vmatpush.msra.mxu0 0.0
  %1176 = vmatpush.msra.mxu0 0.0
  %1177 = vmatpush.msra.mxu0 0.0
  %1178 = vmatpush.msra.mxu0 0.0
  %1179 = vmatpush.msra.mxu0 0.0
  %1180 = vmatpush.msra.mxu0 0.0
  %1181 = vmatpush.msra.mxu0 0.0
  %1182 = vmatpush.msra.mxu0 0.0
  %1183 = vmatpush.msra.mxu0 %v825
  %1184 = vmatpush.msra.mxu0 %v824
  %1185 = vmatpush.msra.mxu0 %v823
  %1186 = vmatpush.msra.mxu0 %v822
  %1187 = vmatmul.f32.gmra.mxu0 %v1169
  %v1188 = vpop.f32.mrf.mxu0
  %v1189 = vadd.f32 0.0, %v1188
  %1190 = vdwg.mxu0
  %v1191 = vadd.f32 %v1168, %v1189
  %v1192 = vxor.u32 %v1191, 2147483648
  %v1193 = vmul.f32 %v1192, 1.442695
  %v1194 = vpow.pop %v1193
  %v1195 = vadd.f32 %v1194, 1.0
  %v1196 = vrcp.pop %v1195
  %v1197 = vmul.f32 %v1195, %v1196
  %v1198 = vsub.f32 1.0, %v1197
  %v1199 = vmul.f32 %v1196, %v1198
  %v1200 = vadd.f32 %v1196, %v1199
  %vm1201 = vweird.f32 %v1195
  %vm1202 = vweird.f32 %v1196
  %vm1203 = vmor %vm1201, %vm1202
  %v1204 = vsel %vm1203, %v1196, %v1200
  %v1205 = vand.u32 2147483647, %v1195
  %vm1206 = vcmp.eq.f32.partialorder %v1205, 8.507059e+37
  %v1207 = vand.u32 %v1195, 2147483648
  %v1208 = vor.u32 1.1754944e-38, %v1207
  %v1209 = vsel %vm1206, %v1208, %v1204
  %v1210 = vmul.f32 1.0, %v1209
  %v1211 = vmul.f32 %v1210, 2.0
  %v1212 = vsub.f32 %v1211, 1.0
  %v1213 = vmul.f32 %v1210, %v1156
  %1215 = vrot.lane.b32.xlu0 %v1212, 64
  %v1216 = vpop.permute.xlu0 %1215
  %v1218 = vmul.f32 %v1210, %v1216
  %1220 = vrot.lane.b32.xlu0 %v1218, 32
  %v1221 = vpop.permute.xlu0 %1220
  %v1223 = vadd.f32 %v1213, %v1221
  %v1224 = vtanh.pop %v1223
  %1226 = vrot.lane.b32.xlu0 %v1224, 64
  %v1227 = vpop.permute.xlu0 %1226
  %v1229 = vmul.f32 %v1210, %v1227
  %1231 = vrot.lane.b32.xlu0 %v1229, 32
  %v1232 = vpop.permute.xlu0 %1231
  %1234 = vst.msk [vmem:[%s587] sm:$0xff] %vm172, %v1232
  %v1235 = vld [vmem:[%s589] sm:$0xff]
  %v1236 = vsel %vm172, %v1232, 0
  %1238 = vmatpush.msra.mxu0 0.0
  %1239 = vmatpush.msra.mxu0 0.0
  %1240 = vmatpush.msra.mxu0 0.0
  %1241 = vmatpush.msra.mxu0 0.0
  %1242 = vmatpush.msra.mxu0 0.0
  %1243 = vmatpush.msra.mxu0 0.0
  %1244 = vmatpush.msra.mxu0 0.0
  %1245 = vmatpush.msra.mxu0 0.0
  %1246 = vmatpush.msra.mxu0 0.0
  %1247 = vmatpush.msra.mxu0 0.0
  %1248 = vmatpush.msra.mxu0 0.0
  %1249 = vmatpush.msra.mxu0 0.0
  %1250 = vmatpush.msra.mxu0 %v825
  %1251 = vmatpush.msra.mxu0 %v824
  %1252 = vmatpush.msra.mxu0 %v823
  %1253 = vmatpush.msra.mxu0 %v822
  %1254 = vmatmul.f32.gmra.mxu0 %v1236
  %v1255 = vpop.f32.mrf.mxu0
  %v1256 = vadd.f32 0.0, %v1255
  %1257 = vdwg.mxu0
  %v1258 = vadd.f32 %v1235, %v1256
  %v1259 = vxor.u32 %v1258, 2147483648
  %v1260 = vmul.f32 %v1259, 1.442695
  %v1261 = vpow.pop %v1260
  %v1262 = vadd.f32 %v1261, 1.0
  %v1263 = vrcp.pop %v1262
  %v1264 = vmul.f32 %v1262, %v1263
  %v1265 = vsub.f32 1.0, %v1264
  %v1266 = vmul.f32 %v1263, %v1265
  %v1267 = vadd.f32 %v1263, %v1266
  %vm1268 = vweird.f32 %v1262
  %vm1269 = vweird.f32 %v1263
  %vm1270 = vmor %vm1268, %vm1269
  %v1271 = vsel %vm1270, %v1263, %v1267
  %v1272 = vand.u32 2147483647, %v1262
  %vm1273 = vcmp.eq.f32.partialorder %v1272, 8.507059e+37
  %v1274 = vand.u32 %v1262, 2147483648
  %v1275 = vor.u32 1.1754944e-38, %v1274
  %v1276 = vsel %vm1273, %v1275, %v1271
  %v1277 = vmul.f32 1.0, %v1276
  %v1278 = vmul.f32 %v1277, 2.0
  %v1279 = vsub.f32 %v1278, 1.0
  %v1280 = vmul.f32 %v1277, %v1223
  %1282 = vrot.lane.b32.xlu0 %v1279, 64
  %v1283 = vpop.permute.xlu0 %1282
  %v1285 = vmul.f32 %v1277, %v1283
  %1287 = vrot.lane.b32.xlu0 %v1285, 32
  %v1288 = vpop.permute.xlu0 %1287
  %v1290 = vadd.f32 %v1280, %v1288
  %v1291 = vtanh.pop %v1290
  %1293 = vrot.lane.b32.xlu0 %v1291, 64
  %v1294 = vpop.permute.xlu0 %1293
  %v1296 = vmul.f32 %v1277, %v1294
  %1298 = vrot.lane.b32.xlu0 %v1296, 32
  %v1299 = vpop.permute.xlu0 %1298
  %1301 = vst.msk [vmem:[%s656] sm:$0xff] %vm172, %v1299
  %v1302 = vld [vmem:[%s658] sm:$0xff]
  %v1303 = vsel %vm172, %v1299, 0
  %1305 = vmatpush.msra.mxu0 0.0
  %1306 = vmatpush.msra.mxu0 0.0
  %1307 = vmatpush.msra.mxu0 0.0
  %1308 = vmatpush.msra.mxu0 0.0
  %1309 = vmatpush.msra.mxu0 0.0
  %1310 = vmatpush.msra.mxu0 0.0
  %1311 = vmatpush.msra.mxu0 0.0
  %1312 = vmatpush.msra.mxu0 0.0
  %1313 = vmatpush.msra.mxu0 0.0
  %1314 = vmatpush.msra.mxu0 0.0
  %1315 = vmatpush.msra.mxu0 0.0
  %1316 = vmatpush.msra.mxu0 0.0
  %1317 = vmatpush.msra.mxu0 %v825
  %1318 = vmatpush.msra.mxu0 %v824
  %1319 = vmatpush.msra.mxu0 %v823
  %1320 = vmatpush.msra.mxu0 %v822
  %1321 = vmatmul.f32.gmra.mxu0 %v1303
  %v1322 = vpop.f32.mrf.mxu0
  %v1323 = vadd.f32 0.0, %v1322
  %1324 = vdwg.mxu0
  %v1325 = vadd.f32 %v1302, %v1323
  %v1326 = vxor.u32 %v1325, 2147483648
  %v1327 = vmul.f32 %v1326, 1.442695
  %v1328 = vpow.pop %v1327
  %v1329 = vadd.f32 %v1328, 1.0
  %v1330 = vrcp.pop %v1329
  %v1331 = vmul.f32 %v1329, %v1330
  %v1332 = vsub.f32 1.0, %v1331
  %v1333 = vmul.f32 %v1330, %v1332
  %v1334 = vadd.f32 %v1330, %v1333
  %vm1335 = vweird.f32 %v1329
  %vm1336 = vweird.f32 %v1330
  %vm1337 = vmor %vm1335, %vm1336
  %v1338 = vsel %vm1337, %v1330, %v1334
  %v1339 = vand.u32 2147483647, %v1329
  %vm1340 = vcmp.eq.f32.partialorder %v1339, 8.507059e+37
  %v1341 = vand.u32 %v1329, 2147483648
  %v1342 = vor.u32 1.1754944e-38, %v1341
  %v1343 = vsel %vm1340, %v1342, %v1338
  %v1344 = vmul.f32 1.0, %v1343
  %v1345 = vmul.f32 %v1344, 2.0
  %v1346 = vsub.f32 %v1345, 1.0
  %v1347 = vmul.f32 %v1344, %v1290
  %1349 = vrot.lane.b32.xlu0 %v1346, 64
  %v1350 = vpop.permute.xlu0 %1349
  %v1352 = vmul.f32 %v1344, %v1350
  %1354 = vrot.lane.b32.xlu0 %v1352, 32
  %v1355 = vpop.permute.xlu0 %1354
  %v1357 = vadd.f32 %v1347, %v1355
  %v1358 = vtanh.pop %v1357
  %1360 = vrot.lane.b32.xlu0 %v1358, 64
  %v1361 = vpop.permute.xlu0 %1360
  %v1363 = vmul.f32 %v1344, %v1361
  %1365 = vrot.lane.b32.xlu0 %v1363, 32
  %v1366 = vpop.permute.xlu0 %1365
  %1368 = vst.msk [vmem:[%s725] sm:$0xff] %vm172, %v1366
  %1369 = vst.msk [vmem:[#allocation4] sm:$0xff] %vm172, %v1366
  %1371 = vrot.lane.b32.xlu0 %v1357, 96
  %v1372 = vpop.permute.xlu0 %1371
  %1374 = vst.msk [vmem:[#allocation5] sm:$0xff] %vm172, %v1372
  %v1375 = vld [vmem:[#allocation7] sm:$0xff]
  %v1376 = vld [vmem:[#allocation7 + $0x8] sm:$0xff]
  %v1377 = vld [vmem:[#allocation7 + $0x10] sm:$0xff]
  %v1378 = vld [vmem:[#allocation7 + $0x18] sm:$0xff]
  %v1379 = vld [vmem:[#allocation7 + $0x20] sm:$0xff]
  %v1380 = vld [vmem:[#allocation7 + $0x28] sm:$0xff]
  %v1381 = vld [vmem:[#allocation7 + $0x30] sm:$0xff]
  %v1382 = vld [vmem:[#allocation7 + $0x38] sm:$0xff]
  %v1383 = vld [vmem:[%s7] sm:$0xff]
  %v1384 = vld [vmem:[%s7 + $0x8] sm:$0xff]
  %v1385 = vld [vmem:[%s7 + $0x10] sm:$0xff]
  %v1386 = vld [vmem:[%s7 + $0x18] sm:$0xff]
  %v1387 = vld [vmem:[%s8] sm:$0x1]
  %v1389 = vperm.slane %v1387, 0
  %v1392 = vsel %vm172, %v1375, 0
  %v1395 = vsel %vm172, %v1376, 0
  %v1398 = vsel %vm172, %v1377, 0
  %v1401 = vsel %vm172, %v1378, 0
  %v1404 = vsel %vm172, %v1379, 0
  %v1407 = vsel %vm172, %v1380, 0
  %v1410 = vsel %vm172, %v1381, 0
  %v1413 = vsel %vm172, %v1382, 0
  %1415 = vmatpush.msra.mxu0 0.0
  %1416 = vmatpush.msra.mxu0 0.0
  %1417 = vmatpush.msra.mxu0 0.0
  %1418 = vmatpush.msra.mxu0 0.0
  %1419 = vmatpush.msra.mxu0 0.0
  %1420 = vmatpush.msra.mxu0 0.0
  %1421 = vmatpush.msra.mxu0 0.0
  %1422 = vmatpush.msra.mxu0 0.0
  %1423 = vmatpush.msra.mxu0 0.0
  %1424 = vmatpush.msra.mxu0 0.0
  %1425 = vmatpush.msra.mxu0 0.0
  %1426 = vmatpush.msra.mxu0 0.0
  %1427 = vmatpush.msra.mxu0 %v1386
  %1428 = vmatpush.msra.mxu0 %v1385
  %1429 = vmatpush.msra.mxu0 %v1384
  %1430 = vmatpush.msra.mxu0 %v1383
  %1431 = vmatmul.f32.gmra.mxu0 %v1392
  %v1432 = vpop.f32.mrf.mxu0
  %v1433 = vadd.f32 %v1389, %v1432
  %1434 = vmatmul.f32.gmra.mxu0 %v1395
  %v1435 = vpop.f32.mrf.mxu0
  %v1436 = vadd.f32 %v1389, %v1435
  %1437 = vmatmul.f32.gmra.mxu0 %v1398
  %v1438 = vpop.f32.mrf.mxu0
  %v1439 = vadd.f32 %v1389, %v1438
  %1440 = vmatmul.f32.gmra.mxu0 %v1401
  %v1441 = vpop.f32.mrf.mxu0
  %v1442 = vadd.f32 %v1389, %v1441
  %1443 = vmatmul.f32.gmra.mxu0 %v1404
  %v1444 = vpop.f32.mrf.mxu0
  %v1445 = vadd.f32 %v1389, %v1444
  %1446 = vmatmul.f32.gmra.mxu0 %v1407
  %v1447 = vpop.f32.mrf.mxu0
  %v1448 = vadd.f32 %v1389, %v1447
  %1449 = vmatmul.f32.gmra.mxu0 %v1410
  %v1450 = vpop.f32.mrf.mxu0
  %v1451 = vadd.f32 %v1389, %v1450
  %1452 = vmatmul.f32.gmra.mxu0 %v1413
  %v1453 = vpop.f32.mrf.mxu0
  %v1454 = vadd.f32 %v1389, %v1453
  %1455 = vdwg.mxu0
  %1456 = vst.msk [vmem:[%s65] sm:$0xff] %vm91, %v1433
  %1457 = vst.msk [vmem:[%s65 + $0x8] sm:$0xff] %vm91, %v1436
  %1458 = vst.msk [vmem:[%s65 + $0x10] sm:$0xff] %vm91, %v1439
  %1459 = vst.msk [vmem:[%s65 + $0x18] sm:$0xff] %vm91, %v1442
  %1460 = vst.msk [vmem:[%s65 + $0x20] sm:$0xff] %vm91, %v1445
  %1461 = vst.msk [vmem:[%s65 + $0x28] sm:$0xff] %vm91, %v1448
  %1462 = vst.msk [vmem:[%s65 + $0x30] sm:$0xff] %vm91, %v1451
  %1463 = vst.msk [vmem:[%s65 + $0x38] sm:$0xff] %vm91, %v1454
  %s1464 = sadd.s32 0, 0
  %s1465 = smul.u32 8, %s1464
  %p1466 = scmp.lt.s32.totalorder %s1465, 7
  %s1467 = scalar_select %p1466, %s1465, 7
  %s1468 = smul.addr %s1467, 8
  %s1469 = scalar_lea.vmem %s9, %s1468
  // Predicated region
  $region42: #{single_rnn_forward.1} parent=0 // pred_check
    _
  $region43: #{single_rnn_forward.1} parent=0 // pred_check_branch
    %1471 = sbr.rel (0) target = $region45
  $region44: #{single_rnn_forward.1} parent=0 // pred_region
    %s1472 = sadd.s32 0, 0
    %s1473 = smul.u32 8, %s1472
  $region45: #{single_rnn_forward.1} parent=0 // pred_fallthru
    _
  // Predicated region
  $region46: #{single_rnn_forward.1} parent=0 // pred_check
    _
  $region47: #{single_rnn_forward.1} parent=0 // pred_check_branch
    %1475 = sbr.rel (0) target = $region49
  $region48: #{single_rnn_forward.1} parent=0 // pred_region
    %s1476 = sadd.s32 0, 0
    %s1477 = smul.u32 8, %s1476
    %p1478 = scmp.lt.s32.totalorder %s1477, 7
    %s1479 = scalar_select %p1478, %s1477, 7
    %s1480 = smul.addr %s1479, 8
    %s1481 = scalar_lea.vmem %s9, %s1480
  $region49: #{single_rnn_forward.1} parent=0 // pred_fallthru
    _

</llo_original>
